<compile_context>
chip_gen: v7x
topology: tpu7x:2x2x1
jax: 0.10.0
libtpu: 0.0.40
codegen_flags: <defaults>
</compile_context>

<pallas_src>
import jax
import jax.numpy as jnp
from jax.experimental import pallas as pl
from jax.experimental.pallas import tpu as pltpu

MODEL_DIM = 128
NUM_LAYERS = 2
BN_EPS = 1e-5

# OGB atom / bond feature cardinalities (AtomEncoder / BondEncoder tables).
ATOM_FEATURE_DIMS = [119, 4, 12, 12, 10, 6, 6, 2, 2]
BOND_FEATURE_DIMS = [5, 6, 2]


def _round_up(v, m):
    return (v + m - 1) // m * m


def gnn_kernel(row_ref, col_ref, edge_emb_ref, x_ref, w1_ref, w2_ref,
               bias_ref, scale_ref, out_ref, aggr_ref, hbf_ref):
    """grid = (layer, edge_tile); out_ref doubles as the resident h carry."""
    layer = pl.program_id(0)
    et = pl.program_id(1)
    n_et = pl.num_programs(1)
    tile_e = row_ref.shape[0]
    np_pad = hbf_ref.shape[0]

    # Very first grid step: load encoded node features into the carry buffer.
    @pl.when(jnp.logical_and(layer == 0, et == 0))
    def _():
        out_ref[...] = x_ref[...]

    # First edge tile of each layer: reset the scatter accumulator and take a
    # bf16 snapshot of h once (reused as the MXU gather operand every tile).
    @pl.when(et == 0)
    def _():
        aggr_ref[...] = jnp.zeros_like(aggr_ref)
        hbf_ref[...] = out_ref[...].astype(jnp.bfloat16)

    # ---- per-edge-tile message passing (indices -> in-VMEM one-hots -> MXU)
    row = row_ref[...]                                     # (tile_e, 1) int32
    col = col_ref[...]                                     # (1, tile_e) int32
    iota_en = jax.lax.broadcasted_iota(jnp.int32, (tile_e, np_pad), 1)
    iota_ne = jax.lax.broadcasted_iota(jnp.int32, (np_pad, tile_e), 0)
    # padded edges carry index -1 -> all-zero one-hot rows/cols (exact).
    gather_oh = jnp.where(row == iota_en, 1.0, 0.0).astype(jnp.bfloat16)
    scatter_oh_t = jnp.where(col == iota_ne, 1.0, 0.0).astype(jnp.bfloat16)

    # x_j = x[row]   (MXU, f32 accumulation)
    x_j = jnp.dot(gather_oh, hbf_ref[...],
                  preferred_element_type=jnp.float32)      # (tile_e, D)
    # message = relu(x_j + edge_embedding)   (f32 elementwise)
    msg = jnp.maximum(x_j + edge_emb_ref[0].astype(jnp.float32), 0.0)
    # scatter-add to target nodes: native-orientation MXU matmul, f32 acc.
    aggr_ref[...] += jnp.dot(scatter_oh_t, msg.astype(jnp.bfloat16),
                             preferred_element_type=jnp.float32)  # (Np, D)

    # ---- last edge tile of the layer: GIN combine + (BN-folded) MLP
    @pl.when(et == n_et - 1)
    def _():
        pre = scale_ref[0] * out_ref[...] + aggr_ref[...]  # (1+eps)*h + aggr
        b = bias_ref[0]                                    # (2, D) f32
        t = jnp.dot(pre.astype(jnp.bfloat16), w1_ref[0],
                    preferred_element_type=jnp.float32) + b[0:1, :]
        t = jnp.maximum(t, 0.0)
        t = jnp.dot(t.astype(jnp.bfloat16), w2_ref[0],
                    preferred_element_type=jnp.float32) + b[1:2, :]
        # ReLU on all layers except the last; dropout is identity in eval.
        t = jnp.where(layer == pl.num_programs(0) - 1, t, jnp.maximum(t, 0.0))
        out_ref[...] = t


def run_gnn_layers(row2d, col2d, edge_embs, x_pad, w1s, w2s, biases, scales,
                   tile_e):
    Np, D = x_pad.shape
    L, Ep, _ = edge_embs.shape
    n_et = Ep // tile_e

    flops = int(L * (4 * Ep * Np * D + 4 * Np * D * D))
    bytes_accessed = int(2 * Ep * 4 + L * Ep * D * 2 + 2 * Np * D * 4
                         + L * (2 * D * D * 2 + 3 * D * 4))
    vmem_needed = (
        2 * Np * D * 4            # out (h carry) + aggr accumulator (f32)
        + Np * D * 2              # bf16 h snapshot
        + 2 * Np * D * 4          # x block (+ pipeline buffer)
        + 4 * tile_e * Np * 2     # in-kernel one-hot temporaries (w/ margin)
        + 8 * tile_e * D * 4      # edge-emb buffers + x_j/msg temporaries
        + 8 * D * D * 2           # double-buffered weights
        + (2 << 20))              # headroom
    vmem_limit = int(min(64 * 1024 * 1024,
                         max(vmem_needed, 32 * 1024 * 1024)))

    return pl.pallas_call(
        gnn_kernel,
        out_shape=jax.ShapeDtypeStruct((Np, D), jnp.float32),
        grid_spec=pltpu.PrefetchScalarGridSpec(
            num_scalar_prefetch=0,
            grid=(L, n_et),
            in_specs=[
                pl.BlockSpec((tile_e, 1), lambda l, e: (e, 0)),        # row
                pl.BlockSpec((1, tile_e), lambda l, e: (0, e)),        # col
                pl.BlockSpec((1, tile_e, D), lambda l, e: (l, e, 0)),  # edge emb
                pl.BlockSpec((Np, D), lambda l, e: (0, 0)),            # x (resident)
                pl.BlockSpec((1, D, D), lambda l, e: (l, 0, 0)),       # W1 (folded)
                pl.BlockSpec((1, D, D), lambda l, e: (l, 0, 0)),       # W2 (folded)
                pl.BlockSpec((1, 2, D), lambda l, e: (l, 0, 0)),       # biases
                pl.BlockSpec((1, 1, D), lambda l, e: (l, 0, 0)),       # (1+eps)
            ],
            out_specs=pl.BlockSpec((Np, D), lambda l, e: (0, 0)),
            scratch_shapes=[pltpu.VMEM((Np, D), jnp.float32),          # aggr
                            pltpu.VMEM((Np, D), jnp.bfloat16)]),       # h bf16
        compiler_params=pltpu.CompilerParams(
            dimension_semantics=("arbitrary", "arbitrary"),
            vmem_limit_bytes=vmem_limit),
        cost_estimate=pl.CostEstimate(flops=flops, transcendentals=0,
                                      bytes_accessed=bytes_accessed),
    )(row2d, col2d, edge_embs, x_pad, w1s, w2s, biases, scales)


def _fold_bn(w, b, gamma, beta, mean, var):
    """Fold an eval-mode BatchNorm1d that follows Linear(w, b). Exact."""
    s = gamma * jax.lax.rsqrt(var + BN_EPS)        # (1, D_out)
    return w * s, b * s + beta - mean * s


def init_params(key):
    def nrm(k, shape, scale=0.05):
        return scale * jax.random.normal(k, shape, dtype=jnp.float32)

    keys = jax.random.split(key, 4 + NUM_LAYERS)
    params = {}
    atom_keys = jax.random.split(keys[0], len(ATOM_FEATURE_DIMS))
    params["atom_tables"] = [nrm(atom_keys[i], (d, MODEL_DIM))
                             for i, d in enumerate(ATOM_FEATURE_DIMS)]
    layers = []
    for layer in range(NUM_LAYERS):
        lk = jax.random.split(keys[4 + layer], 10)
        bond_keys = jax.random.split(lk[0], len(BOND_FEATURE_DIMS))
        p = {
            "bond_tables": [nrm(bond_keys[i], (d, MODEL_DIM))
                            for i, d in enumerate(BOND_FEATURE_DIMS)],
            "eps": jnp.zeros((1, 1), jnp.float32),            # torch.Tensor([0])
            "w1": nrm(lk[1], (MODEL_DIM, MODEL_DIM)),
            "b1": nrm(lk[2], (1, MODEL_DIM)),
            "bn1_g": 1.0 + nrm(lk[3], (1, MODEL_DIM), 0.1),
            "bn1_b": nrm(lk[4], (1, MODEL_DIM), 0.1),
            "bn1_m": nrm(lk[5], (1, MODEL_DIM), 0.1),
            "bn1_v": 0.5 + jnp.abs(nrm(lk[6], (1, MODEL_DIM), 0.2)),
            "w2": nrm(lk[7], (MODEL_DIM, MODEL_DIM)),
            "b2": nrm(lk[8], (1, MODEL_DIM)),
            "bn_out_g": jnp.ones((1, MODEL_DIM), jnp.float32),
            "bn_out_b": jnp.zeros((1, MODEL_DIM), jnp.float32),
            "bn_out_m": nrm(lk[9], (1, MODEL_DIM), 0.1),
            "bn_out_v": jnp.ones((1, MODEL_DIM), jnp.float32),
        }
        layers.append(p)
    params["layers"] = layers
    return params


def gnn_forward(params, x_feats, edge_index, edge_attr):
    N = x_feats.shape[0]
    E = edge_attr.shape[0]
    D = MODEL_DIM
    Np = _round_up(N, 128)                       # lane dim of one-hots / h
    tile_e = min(512, _round_up(E, 128))         # edge tile (multiple of 128)
    Ep = _round_up(E, tile_e)

    # AtomEncoder: tiny embedding-table gathers stay in plain JAX (glue).
    # TODO(synk): no benefit from a Pallas gather at these table sizes.
    h = jnp.zeros((N, D), jnp.float32)
    for i, tab in enumerate(params["atom_tables"]):
        h = h + jnp.take(tab, x_feats[:, i], axis=0)
    x_pad = jnp.zeros((Np, D), jnp.float32).at[:N].set(h)

    row = edge_index[0].astype(jnp.int32)
    col = edge_index[1].astype(jnp.int32)
    # Padded edges get index -1 -> all-zero one-hot rows inside the kernel.
    row_p = jnp.full((Ep, 1), -1, jnp.int32).at[:E, 0].set(row)
    col_p = jnp.full((1, Ep), -1, jnp.int32).at[0, :E].set(col)

    bond_idx = edge_attr[:, :3].astype(jnp.int32)
    edge_embs, w1s, w2s, biases, scales = [], [], [], [], []
    for layer in range(NUM_LAYERS):
        p = params["layers"][layer]
        # per-layer BondEncoder (each GINConv owns its own tables)
        emb = jnp.zeros((E, D), jnp.float32)
        for i, tab in enumerate(p["bond_tables"]):
            emb = emb + jnp.take(tab, bond_idx[:, i], axis=0)
        edge_embs.append(jnp.zeros((Ep, D), jnp.bfloat16).at[:E].set(
            emb.astype(jnp.bfloat16)))

        # Fold eval-mode BatchNorms into the Linear weights/biases (exact).
        w1f, b1f = _fold_bn(p["w1"], p["b1"], p["bn1_g"], p["bn1_b"],
                            p["bn1_m"], p["bn1_v"])
        w2f, b2f = _fold_bn(p["w2"], p["b2"], p["bn_out_g"], p["bn_out_b"],
                            p["bn_out_m"], p["bn_out_v"])
        w1s.append(w1f.astype(jnp.bfloat16))
        w2s.append(w2f.astype(jnp.bfloat16))
        biases.append(jnp.concatenate([b1f, b2f], axis=0))          # (2, D)
        scales.append((1.0 + p["eps"].reshape(1, 1))
                      * jnp.ones((1, D), jnp.float32))               # (1, D)

    edge_embs = jnp.stack(edge_embs)          # (L, Ep, D) bf16
    w1s = jnp.stack(w1s)                      # (L, D, D)  bf16
    w2s = jnp.stack(w2s)                      # (L, D, D)  bf16
    biases = jnp.stack(biases)                # (L, 2, D)  f32
    scales = jnp.stack(scales)                # (L, 1, D)  f32

    out = run_gnn_layers(row_p, col_p, edge_embs, x_pad, w1s, w2s, biases,
                         scales, tile_e)
    return out[:N]  # JK == 'last'; drop padded node rows


if __name__ == "__main__":
    key = jax.random.PRNGKey(0)
    k_param, k_x, k_ei, k_ea = jax.random.split(key, 4)

    N, E = 16, 32
    params = init_params(k_param)

    # node integer features (N, 9), each column within its cardinality
    xk = jax.random.split(k_x, len(ATOM_FEATURE_DIMS))
    x_feats = jnp.stack(
        [jax.random.randint(xk[i], (N,), 0, d)
         for i, d in enumerate(ATOM_FEATURE_DIMS)], axis=1).astype(jnp.int32)

    # edge_index (2, E): row = source, col = target
    edge_index = jax.random.randint(k_ei, (2, E), 0, N).astype(jnp.int32)

    # edge_attr (E, 3) float (first 3 cols are bond categorical features)
    ek = jax.random.split(k_ea, len(BOND_FEATURE_DIMS))
    edge_attr = jnp.stack(
        [jax.random.randint(ek[i], (E,), 0, d)
         for i, d in enumerate(BOND_FEATURE_DIMS)], axis=1).astype(jnp.float32)

    out = gnn_forward(params, x_feats, edge_index, edge_attr)
    jax.block_until_ready(out)
    assert out.shape == (N, MODEL_DIM)
    print("KERNEL_OK")
</pallas_src>

<mosaic_0001>
module attributes {stable_mosaic.version = 11 : i64} {
  func.func @gnn_kernel(%arg0: i32, %arg1: i32, %arg2: memref<128x1xi32, #tpu.memory_space<vmem>>, %arg3: memref<1x128xi32, #tpu.memory_space<vmem>>, %arg4: memref<1x128x128xbf16, #tpu.memory_space<vmem>>, %arg5: memref<128x128xf32, #tpu.memory_space<vmem>>, %arg6: memref<1x128x128xbf16, #tpu.memory_space<vmem>>, %arg7: memref<1x128x128xbf16, #tpu.memory_space<vmem>>, %arg8: memref<1x2x128xf32, #tpu.memory_space<vmem>>, %arg9: memref<1x1x128xf32, #tpu.memory_space<vmem>>, %arg10: memref<128x128xf32, #tpu.memory_space<vmem>>, %arg11: memref<128x128xf32, #tpu.memory_space<vmem>>, %arg12: memref<128x128xbf16, #tpu.memory_space<vmem>>) attributes {dimension_semantics = [#tpu.dimension_semantics<arbitrary>, #tpu.dimension_semantics<arbitrary>], iteration_bounds = array<i64: 2, 1>, scalar_prefetch = 0 : i64, scratch_operands = 2 : i64, tpu.core_type = #tpu.core_type<tc>, window_params = [{transform_indices = @transform_0, window_bounds = array<i64: 128, 1>}, {transform_indices = @transform_1, window_bounds = array<i64: 1, 128>}, {transform_indices = @transform_2, window_bounds = array<i64: 1, 128, 128>}, {pipeline_mode = #tpu.pipeline_mode<synchronous>, transform_indices = @transform_3, window_bounds = array<i64: 128, 128>}, {transform_indices = @transform_4, window_bounds = array<i64: 1, 128, 128>}, {transform_indices = @transform_5, window_bounds = array<i64: 1, 128, 128>}, {transform_indices = @transform_6, window_bounds = array<i64: 1, 2, 128>}, {transform_indices = @transform_7, window_bounds = array<i64: 1, 1, 128>}, {pipeline_mode = #tpu.pipeline_mode<synchronous>, transform_indices = @transform_8, window_bounds = array<i64: 128, 128>}]} {
    %c0_i32 = arith.constant 0 : i32
    %0 = arith.cmpi eq, %arg0, %c0_i32 : i32
    %c0_i32_0 = arith.constant 0 : i32
    %1 = arith.cmpi eq, %arg1, %c0_i32_0 : i32
    %2 = arith.andi %0, %1 : i1
    %3 = arith.extui %2 : i1 to i32
    %c0_i32_1 = arith.constant 0 : i32
    %4 = arith.cmpi ne, %3, %c0_i32_1 : i32
    scf.if %4 {
      %c0_24 = arith.constant 0 : index
      %c0_25 = arith.constant 0 : index
      %40 = vector.load %arg5[%c0_24, %c0_25] : memref<128x128xf32, #tpu.memory_space<vmem>>, vector<128x128xf32>
      %c0_26 = arith.constant 0 : index
      %c0_27 = arith.constant 0 : index
      %41 = vector.load %arg10[%c0_26, %c0_27] : memref<128x128xf32, #tpu.memory_space<vmem>>, vector<128x128xf32>
      tpu.vector_store %arg10[%c0_26, %c0_27], %40 {strides = array<i32>} : memref<128x128xf32, #tpu.memory_space<vmem>>, vector<128x128xf32>,
    } else {
    }
    %c0_i32_2 = arith.constant 0 : i32
    %5 = arith.cmpi eq, %arg1, %c0_i32_2 : i32
    %6 = arith.extui %5 : i1 to i32
    %c0_i32_3 = arith.constant 0 : i32
    %7 = arith.cmpi ne, %6, %c0_i32_3 : i32
    scf.if %7 {
      %cst_24 = arith.constant 0.000000e+00 : f32
      %40 = vector.broadcast %cst_24 : f32 to vector<128x128xf32>
      %c0_25 = arith.constant 0 : index
      %c0_26 = arith.constant 0 : index
      %41 = vector.load %arg11[%c0_25, %c0_26] : memref<128x128xf32, #tpu.memory_space<vmem>>, vector<128x128xf32>
      tpu.vector_store %arg11[%c0_25, %c0_26], %40 {strides = array<i32>} : memref<128x128xf32, #tpu.memory_space<vmem>>, vector<128x128xf32>,
      %c0_27 = arith.constant 0 : index
      %c0_28 = arith.constant 0 : index
      %42 = vector.load %arg10[%c0_27, %c0_28] : memref<128x128xf32, #tpu.memory_space<vmem>>, vector<128x128xf32>
      %43 = arith.truncf %42 : vector<128x128xf32> to vector<128x128xbf16>
      %c0_29 = arith.constant 0 : index
      %c0_30 = arith.constant 0 : index
      %44 = vector.load %arg12[%c0_29, %c0_30] : memref<128x128xbf16, #tpu.memory_space<vmem>>, vector<128x128xbf16>
      tpu.vector_store %arg12[%c0_29, %c0_30], %43 {strides = array<i32>} : memref<128x128xbf16, #tpu.memory_space<vmem>>, vector<128x128xbf16>,
    } else {
    }
    %c0 = arith.constant 0 : index
    %c0_4 = arith.constant 0 : index
    %8 = vector.load %arg2[%c0, %c0_4] : memref<128x1xi32, #tpu.memory_space<vmem>>, vector<128x1xi32>
    %c0_5 = arith.constant 0 : index
    %c0_6 = arith.constant 0 : index
    %9 = vector.load %arg3[%c0_5, %c0_6] : memref<1x128xi32, #tpu.memory_space<vmem>>, vector<1x128xi32>
    %10 = tpu.iota {dimensions = array<i32: 1>} : vector<128x128xi32>
    %11 = tpu.iota {dimensions = array<i32: 0>} : vector<128x128xi32>
    %12 = vector.broadcast %8 : vector<128x1xi32> to vector<128x128xi32>
    %13 = arith.cmpi eq, %12, %10 : vector<128x128xi32>
    %cst = arith.constant 1.000000e+00 : f32
    %cst_7 = arith.constant 0.000000e+00 : f32
    %14 = vector.broadcast %cst : f32 to vector<128x128xf32>
    %15 = vector.broadcast %cst_7 : f32 to vector<128x128xf32>
    %16 = arith.select %13, %14, %15 : vector<128x128xi1>, vector<128x128xf32>
    %17 = arith.truncf %16 : vector<128x128xf32> to vector<128x128xbf16>
    %18 = vector.broadcast %9 : vector<1x128xi32> to vector<128x128xi32>
    %19 = arith.cmpi eq, %18, %11 : vector<128x128xi32>
    %cst_8 = arith.constant 1.000000e+00 : f32
    %cst_9 = arith.constant 0.000000e+00 : f32
    %20 = vector.broadcast %cst_8 : f32 to vector<128x128xf32>
    %21 = vector.broadcast %cst_9 : f32 to vector<128x128xf32>
    %22 = arith.select %19, %20, %21 : vector<128x128xi1>, vector<128x128xf32>
    %23 = arith.truncf %22 : vector<128x128xf32> to vector<128x128xbf16>
    %c0_10 = arith.constant 0 : index
    %c0_11 = arith.constant 0 : index
    %24 = vector.load %arg12[%c0_10, %c0_11] : memref<128x128xbf16, #tpu.memory_space<vmem>>, vector<128x128xbf16>
    %cst_12 = arith.constant dense<0.000000e+00> : vector<128x128xf32>
    %25 = tpu.matmul %17, %24, %cst_12 {dimension_numbers = #tpu.dot_dimension_numbers<[1], [0], [0], [1], [0, 0, 1, 1], [], []>} : vector<128x128xbf16>, vector<128x128xbf16>, vector<128x128xf32> -> vector<128x128xf32>
    %c0_13 = arith.constant 0 : index
    %c0_14 = arith.constant 0 : index
    %c0_15 = arith.constant 0 : index
    %26 = vector.load %arg4[%c0_13, %c0_14, %c0_15] : memref<1x128x128xbf16, #tpu.memory_space<vmem>>, vector<1x128x128xbf16>
    %27 = vector.shape_cast %26 : vector<1x128x128xbf16> to vector<128x128xbf16>
    %28 = arith.extf %27 : vector<128x128xbf16> to vector<128x128xf32>
    %29 = arith.addf %25, %28 : vector<128x128xf32>
    %cst_16 = arith.constant 0.000000e+00 : f32
    %30 = vector.broadcast %cst_16 : f32 to vector<128x128xf32>
    %31 = arith.maximumf %29, %30 : vector<128x128xf32>
    %c0_17 = arith.constant 0 : index
    %c0_18 = arith.constant 0 : index
    %32 = vector.load %arg11[%c0_17, %c0_18] : memref<128x128xf32, #tpu.memory_space<vmem>>, vector<128x128xf32>
    %33 = arith.truncf %31 : vector<128x128xf32> to vector<128x128xbf16>
    %cst_19 = arith.constant dense<0.000000e+00> : vector<128x128xf32>
    %34 = tpu.matmul %23, %33, %cst_19 {dimension_numbers = #tpu.dot_dimension_numbers<[1], [0], [0], [1], [0, 0, 1, 1], [], []>} : vector<128x128xbf16>, vector<128x128xbf16>, vector<128x128xf32> -> vector<128x128xf32>
    %35 = arith.addf %32, %34 : vector<128x128xf32>
    %c0_20 = arith.constant 0 : index
    %c0_21 = arith.constant 0 : index
    %36 = vector.load %arg11[%c0_20, %c0_21] : memref<128x128xf32, #tpu.memory_space<vmem>>, vector<128x128xf32>
    tpu.vector_store %arg11[%c0_20, %c0_21], %35 {strides = array<i32>} : memref<128x128xf32, #tpu.memory_space<vmem>>, vector<128x128xf32>,
    %c0_i32_22 = arith.constant 0 : i32
    %37 = arith.cmpi eq, %arg1, %c0_i32_22 : i32
    %38 = arith.extui %37 : i1 to i32
    %c0_i32_23 = arith.constant 0 : i32
    %39 = arith.cmpi ne, %38, %c0_i32_23 : i32
    scf.if %39 {
      %c0_24 = arith.constant 0 : index
      %c0_25 = arith.constant 0 : index
      %c0_26 = arith.constant 0 : index
      %40 = vector.load %arg9[%c0_24, %c0_25, %c0_26] : memref<1x1x128xf32, #tpu.memory_space<vmem>>, vector<1x1x128xf32>
      %41 = vector.shape_cast %40 : vector<1x1x128xf32> to vector<1x128xf32>
      %c0_27 = arith.constant 0 : index
      %c0_28 = arith.constant 0 : index
      %42 = vector.load %arg10[%c0_27, %c0_28] : memref<128x128xf32, #tpu.memory_space<vmem>>, vector<128x128xf32>
      %43 = vector.broadcast %41 : vector<1x128xf32> to vector<128x128xf32>
      %44 = arith.mulf %43, %42 : vector<128x128xf32>
      %c0_29 = arith.constant 0 : index
      %c0_30 = arith.constant 0 : index
      %45 = vector.load %arg11[%c0_29, %c0_30] : memref<128x128xf32, #tpu.memory_space<vmem>>, vector<128x128xf32>
      %46 = arith.addf %44, %45 : vector<128x128xf32>
      %c0_31 = arith.constant 0 : index
      %c0_32 = arith.constant 0 : index
      %c0_33 = arith.constant 0 : index
      %47 = vector.load %arg8[%c0_31, %c0_32, %c0_33] : memref<1x2x128xf32, #tpu.memory_space<vmem>>, vector<1x2x128xf32>
      %48 = vector.shape_cast %47 : vector<1x2x128xf32> to vector<2x128xf32>
      %49 = arith.truncf %46 : vector<128x128xf32> to vector<128x128xbf16>
      %c0_34 = arith.constant 0 : index
      %c0_35 = arith.constant 0 : index
      %c0_36 = arith.constant 0 : index
      %50 = vector.load %arg6[%c0_34, %c0_35, %c0_36] : memref<1x128x128xbf16, #tpu.memory_space<vmem>>, vector<1x128x128xbf16>
      %51 = vector.shape_cast %50 : vector<1x128x128xbf16> to vector<128x128xbf16>
      %cst_37 = arith.constant dense<0.000000e+00> : vector<128x128xf32>
      %52 = tpu.matmul %49, %51, %cst_37 {dimension_numbers = #tpu.dot_dimension_numbers<[1], [0], [0], [1], [0, 0, 1, 1], [], []>} : vector<128x128xbf16>, vector<128x128xbf16>, vector<128x128xf32> -> vector<128x128xf32>
      %53 = vector.extract_strided_slice %48 {offsets = [0, 0], sizes = [1, 128], strides = [1, 1]} : vector<2x128xf32> to vector<1x128xf32>
      %54 = vector.broadcast %53 : vector<1x128xf32> to vector<128x128xf32>
      %55 = arith.addf %52, %54 : vector<128x128xf32>
      %cst_38 = arith.constant 0.000000e+00 : f32
      %56 = vector.broadcast %cst_38 : f32 to vector<128x128xf32>
      %57 = arith.maximumf %55, %56 : vector<128x128xf32>
      %58 = arith.truncf %57 : vector<128x128xf32> to vector<128x128xbf16>
      %c0_39 = arith.constant 0 : index
      %c0_40 = arith.constant 0 : index
      %c0_41 = arith.constant 0 : index
      %59 = vector.load %arg7[%c0_39, %c0_40, %c0_41] : memref<1x128x128xbf16, #tpu.memory_space<vmem>>, vector<1x128x128xbf16>
      %60 = vector.shape_cast %59 : vector<1x128x128xbf16> to vector<128x128xbf16>
      %cst_42 = arith.constant dense<0.000000e+00> : vector<128x128xf32>
      %61 = tpu.matmul %58, %60, %cst_42 {dimension_numbers = #tpu.dot_dimension_numbers<[1], [0], [0], [1], [0, 0, 1, 1], [], []>} : vector<128x128xbf16>, vector<128x128xbf16>, vector<128x128xf32> -> vector<128x128xf32>
      %62 = vector.extract_strided_slice %48 {offsets = [1, 0], sizes = [1, 128], strides = [1, 1]} : vector<2x128xf32> to vector<1x128xf32>
      %63 = vector.broadcast %62 : vector<1x128xf32> to vector<128x128xf32>
      %64 = arith.addf %61, %63 : vector<128x128xf32>
      %c1_i32 = arith.constant 1 : i32
      %65 = arith.cmpi eq, %arg0, %c1_i32 : i32
      %cst_43 = arith.constant 0.000000e+00 : f32
      %66 = vector.broadcast %cst_43 : f32 to vector<128x128xf32>
      %67 = arith.maximumf %64, %66 : vector<128x128xf32>
      %68 = arith.select %65, %64, %67 : vector<128x128xf32>
      %c0_44 = arith.constant 0 : index
      %c0_45 = arith.constant 0 : index
      %69 = vector.load %arg10[%c0_44, %c0_45] : memref<128x128xf32, #tpu.memory_space<vmem>>, vector<128x128xf32>
      tpu.vector_store %arg10[%c0_44, %c0_45], %68 {strides = array<i32>} : memref<128x128xf32, #tpu.memory_space<vmem>>, vector<128x128xf32>,
    } else {
    }
    return
  }
  func.func @transform_0(%arg0: i32, %arg1: i32) -> (i32, i32) {
    %c0_i32 = arith.constant 0 : i32
    %c0_i32_0 = arith.constant 0 : i32
    return %arg1, %c0_i32 : i32, i32
  }
  func.func @transform_1(%arg0: i32, %arg1: i32) -> (i32, i32) {
    %c0_i32 = arith.constant 0 : i32
    %c0_i32_0 = arith.constant 0 : i32
    return %c0_i32, %arg1 : i32, i32
  }
  func.func @transform_2(%arg0: i32, %arg1: i32) -> (i32, i32, i32) {
    %c0_i32 = arith.constant 0 : i32
    %c0_i32_0 = arith.constant 0 : i32
    return %arg0, %arg1, %c0_i32 : i32, i32, i32
  }
  func.func @transform_3(%arg0: i32, %arg1: i32) -> (i32, i32) {
    %c0_i32 = arith.constant 0 : i32
    %c0_i32_0 = arith.constant 0 : i32
    %c0_i32_1 = arith.constant 0 : i32
    return %c0_i32, %c0_i32_0 : i32, i32
  }
  func.func @transform_4(%arg0: i32, %arg1: i32) -> (i32, i32, i32) {
    %c0_i32 = arith.constant 0 : i32
    %c0_i32_0 = arith.constant 0 : i32
    %c0_i32_1 = arith.constant 0 : i32
    return %arg0, %c0_i32, %c0_i32_0 : i32, i32, i32
  }
  func.func @transform_5(%arg0: i32, %arg1: i32) -> (i32, i32, i32) {
    %c0_i32 = arith.constant 0 : i32
    %c0_i32_0 = arith.constant 0 : i32
    %c0_i32_1 = arith.constant 0 : i32
    return %arg0, %c0_i32, %c0_i32_0 : i32, i32, i32
  }
  func.func @transform_6(%arg0: i32, %arg1: i32) -> (i32, i32, i32) {
    %c0_i32 = arith.constant 0 : i32
    %c0_i32_0 = arith.constant 0 : i32
    %c0_i32_1 = arith.constant 0 : i32
    return %arg0, %c0_i32, %c0_i32_0 : i32, i32, i32
  }
  func.func @transform_7(%arg0: i32, %arg1: i32) -> (i32, i32, i32) {
    %c0_i32 = arith.constant 0 : i32
    %c0_i32_0 = arith.constant 0 : i32
    %c0_i32_1 = arith.constant 0 : i32
    return %arg0, %c0_i32, %c0_i32_0 : i32, i32, i32
  }
  func.func @transform_8(%arg0: i32, %arg1: i32) -> (i32, i32) {
    %c0_i32 = arith.constant 0 : i32
    %c0_i32_0 = arith.constant 0 : i32
    %c0_i32_1 = arith.constant 0 : i32
    return %c0_i32, %c0_i32_0 : i32, i32
  }
}

</mosaic_0001>

<llo_original>
// kernel: tpu_custom_call.1
$region0: #{tpu_custom_call.1}
  #allocation0 [shape = 'u32[]', space=smem, size = 0x4, offset = 0x4, fixed_abs, tag = 'smem constant byte address 0x4 - core index']
  #allocation1 [shape = 'u32[144,128]{1,0:T(1,128)}', space=vmem, size = 0x12000, scoped, tag = 'internal scratch']
  #allocation2 [shape = 'f32[128,128]{1,0:T(8,128)}', space=vmem, size = 0x10000, scoped, tag = 'scratch operand']
  #allocation3 [shape = 'bf16[128,128]{1,0:T(16,128)(2,1)}', space=vmem, size = 0x8000, scoped, tag = 'scratch operand']
  %s0 = inlined_call_operand.vmem [shape: s32[128,1], index: 0, kind: input, shape index: {}]
  %s1 = inlined_call_operand.vmem [shape: s32[1,128], index: 1, kind: input, shape index: {}]
  %s2 = inlined_call_operand.vmem [shape: bf16[2,128,128], index: 2, kind: input, shape index: {}]
  %s3 = inlined_call_operand.hbm [shape: f32[128,128], index: 3, kind: input, shape index: {}]
  %s4 = inlined_call_operand.hbm [shape: bf16[2,128,128], index: 4, kind: input, shape index: {}]
  %s5 = inlined_call_operand.hbm [shape: bf16[2,128,128], index: 5, kind: input, shape index: {}]
  %s6 = inlined_call_operand.vmem [shape: f32[2,2,128], index: 6, kind: input, shape index: {}]
  %s7 = inlined_call_operand.vmem [shape: f32[2,1,128], index: 7, kind: input, shape index: {}]
  %s8 = inlined_call_operand.hbm [shape: f32[128,128], index: 8, kind: output, shape index: {}]
  %s9 = sld [smem:[#allocation0]]
  $region89: #{tpu_custom_call.1} parent=0
    _
  %s11 = ssub.s32 1, %s9
  %s12 = scalar_select 0, %s11, %s9
  $region1: #{tpu_custom_call.1} parent=0
    #allocation4 [shape = 'u8[65536]{0}', space=vmem, size = 0x10000, scoped, tag = 'input window, operand 3, single buffered']
    #allocation5 [shape = 's32[2]{0}', space=sflag, size = 0x8, scoped, tag = 'scoped memory for tpu_custom_call.1']
    #allocation6 [shape = 's32[2]{0}', space=sflag, size = 0x8, scoped, tag = 'scoped memory for tpu_custom_call.1']
    #allocation7 [shape = 'u8[65536]{0}', space=vmem, size = 0x10000, scoped, tag = 'input window, operand 4']
    #allocation8 [shape = 's32[2]{0}', space=sflag, size = 0x8, scoped, tag = 'scoped memory for tpu_custom_call.1']
    #allocation9 [shape = 'u8[65536]{0}', space=vmem, size = 0x10000, scoped, tag = 'input window, operand 5']
    #allocation10 [shape = 'u8[65536]{0}', space=vmem, size = 0x10000, scoped, tag = 'output window, operand 0, single buffered']
    %13 = vsyncpa [#allocation5], 0
    %14 = vsyncpa [#allocation8], 0
    %s15 = scalar_lea.sflag [#allocation8], 1
    %16 = vsyncpa %s15, 0
    %17 = vsyncpa [#allocation6], 0
    loop: start=0, step=1, limit=4
    $region2: #{tpu_custom_call.1} parent=1 // loop_pre_header
      _
    $region3: #{tpu_custom_call.1} parent=1 // loop_header
      %s19 = sphi 0, %s23
      %p20 = scmp.ge.s32.totalorder %s19, 4
      %s26 = sphi 0, %s38
      %s27 = sphi 0, %s34
      %s28 = sphi 0, %s26
      %s29 = sphi 0, %s27
      %s30 = sphi 0, %s28
      %s31 = sphi 0, %s29
      %s41 = sphi 0, %s43
      %s44 = sphi 0, %s41
      %s45 = sphi 0, %s44
      %s61 = sphi 0, %s45
      %s67 = sphi 0, %s69
      %s70 = sphi 0, %s67
      %s71 = sphi 0, %s70
      %s87 = sphi 0, %s71
      %s95 = sphi 0, %s97
      %s98 = sphi 0, %s95
      %s99 = sphi 0, %s98
      %s115 = sphi 0, %s99
      %s119 = sphi 0, %s119
      %s121 = sphi 0, %s119
      %s122 = sphi 0, %s121
      %s136 = sphi 0, %s122
      %s142 = sphi 0, %s144
      %s145 = sphi 0, %s142
      %s146 = sphi 0, %s145
      %s162 = sphi 0, %s146
      %s168 = sphi 0, %s170
      %s171 = sphi 0, %s168
      %s172 = sphi 0, %s171
      %s188 = sphi 0, %s172
      %s194 = sphi 0, %s196
      %s197 = sphi 0, %s194
      %s198 = sphi 0, %s197
      %s214 = sphi 0, %s198
      %s220 = sphi 0, %s222
      %s223 = sphi 0, %s220
      %s224 = sphi 0, %s223
      %s240 = sphi 0, %s224
      %s244 = sphi 0, %s244
      %s246 = sphi 0, %s244
      %s247 = sphi 0, %s246
      %s261 = sphi 0, %s247
    $region4: #{tpu_custom_call.1} parent=1 // loop_header_branch
      %22 = sbr.rel (%p20) target = $region8
    $region5: #{tpu_custom_call.1} parent=1 // loop_body
      %s24 = ssub.s32 %s19, 1
      %s25 = ssub.s32 %s19, 2
      %s32 = sadd.s32 1, %s27
      %p33 = scmp.ge.s32.totalorder %s32, 1
      %s34 = scalar_select %p33, 0, %s32
      %s35 = sadd.s32 1, %s26
      %s36 = scalar_select %p33, %s35, %s26
      %p37 = scmp.ge.s32.totalorder %s36, 2
      %s38 = scalar_select %p37, 0, %s36
      %s39 = ssub.s32 %s27, %s34
      %p40 = scmp.eq.s32.totalorder %s39, 0
      %s42 = sadd.s32 %s41, 1
      %s43 = scalar_select %p40, %s41, %s42
      %p46 = pneg %p40
      %p47 = scmp.eq.s32.totalorder %s19, 1
      %p48 = por %p46, %p47
      %p49 = scmp.ne.s32.totalorder %s41, %s44
      %p50 = scmp.eq.s32.totalorder %s19, 0
      %p51 = por %p49, %p50
      %p52 = scmp.ne.s32.totalorder %s41, %s44
      %p53 = scmp.eq.s32.totalorder %s24, 1
      %p54 = por %p52, %p53
      %p55 = scmp.ne.s32.totalorder %s44, %s45
      %p56 = scmp.eq.s32.totalorder %s24, 0
      %p57 = por %p55, %p56
      %p58 = scmp.ne.s32.totalorder %s44, %s45
      %p59 = scmp.eq.s32.totalorder %s25, 1
      %p60 = por %p58, %p59
      %p62 = scmp.ne.s32.totalorder %s45, %s61
      %p63 = scmp.eq.s32.totalorder %s25, 0
      %p64 = por %p62, %p63
      %s65 = ssub.s32 %s27, %s34
      %p66 = scmp.eq.s32.totalorder %s65, 0
      %s68 = sadd.s32 %s67, 1
      %s69 = scalar_select %p66, %s67, %s68
      %p72 = pneg %p66
      %p73 = scmp.eq.s32.totalorder %s19, 1
      %p74 = por %p72, %p73
      %p75 = scmp.ne.s32.totalorder %s67, %s70
      %p76 = scmp.eq.s32.totalorder %s19, 0
      %p77 = por %p75, %p76
      %p78 = scmp.ne.s32.totalorder %s67, %s70
      %p79 = scmp.eq.s32.totalorder %s24, 1
      %p80 = por %p78, %p79
      %p81 = scmp.ne.s32.totalorder %s70, %s71
      %p82 = scmp.eq.s32.totalorder %s24, 0
      %p83 = por %p81, %p82
      %p84 = scmp.ne.s32.totalorder %s70, %s71
      %p85 = scmp.eq.s32.totalorder %s25, 1
      %p86 = por %p84, %p85
      %p88 = scmp.ne.s32.totalorder %s71, %s87
      %p89 = scmp.eq.s32.totalorder %s25, 0
      %p90 = por %p88, %p89
      %s91 = ssub.s32 %s26, %s38
      %s92 = ssub.s32 %s27, %s34
      %s93 = sor.u32 %s91, %s92
      %p94 = scmp.eq.s32.totalorder %s93, 0
      %s96 = sadd.s32 %s95, 1
      %s97 = scalar_select %p94, %s95, %s96
      %p100 = pneg %p94
      %p101 = scmp.eq.s32.totalorder %s19, 1
      %p102 = por %p100, %p101
      %p103 = scmp.ne.s32.totalorder %s95, %s98
      %p104 = scmp.eq.s32.totalorder %s19, 0
      %p105 = por %p103, %p104
      %p106 = scmp.ne.s32.totalorder %s95, %s98
      %p107 = scmp.eq.s32.totalorder %s24, 1
      %p108 = por %p106, %p107
      %p109 = scmp.ne.s32.totalorder %s98, %s99
      %p110 = scmp.eq.s32.totalorder %s24, 0
      %p111 = por %p109, %p110
      %p112 = scmp.ne.s32.totalorder %s98, %s99
      %p113 = scmp.eq.s32.totalorder %s25, 1
      %p114 = por %p112, %p113
      %p116 = scmp.ne.s32.totalorder %s99, %s115
      %p117 = scmp.eq.s32.totalorder %s25, 0
      %p118 = por %p116, %p117
      %s120 = sadd.s32 %s119, 1
      %p123 = scmp.eq.s32.totalorder %s19, 1
      %p124 = scmp.ne.s32.totalorder %s119, %s121
      %p125 = scmp.eq.s32.totalorder %s19, 0
      %p126 = por %p124, %p125
      %p127 = scmp.ne.s32.totalorder %s119, %s121
      %p128 = scmp.eq.s32.totalorder %s24, 1
      %p129 = por %p127, %p128
      %p130 = scmp.ne.s32.totalorder %s121, %s122
      %p131 = scmp.eq.s32.totalorder %s24, 0
      %p132 = por %p130, %p131
      %p133 = scmp.ne.s32.totalorder %s121, %s122
      %p134 = scmp.eq.s32.totalorder %s25, 1
      %p135 = por %p133, %p134
      %p137 = scmp.ne.s32.totalorder %s122, %s136
      %p138 = scmp.eq.s32.totalorder %s25, 0
      %p139 = por %p137, %p138
      %s140 = ssub.s32 %s26, %s38
      %p141 = scmp.eq.s32.totalorder %s140, 0
      %s143 = sadd.s32 %s142, 1
      %s144 = scalar_select %p141, %s142, %s143
      %p147 = pneg %p141
      %p148 = scmp.eq.s32.totalorder %s19, 1
      %p149 = por %p147, %p148
      %p150 = scmp.ne.s32.totalorder %s142, %s145
      %p151 = scmp.eq.s32.totalorder %s19, 0
      %p152 = por %p150, %p151
      %p153 = scmp.ne.s32.totalorder %s142, %s145
      %p154 = scmp.eq.s32.totalorder %s24, 1
      %p155 = por %p153, %p154
      %p156 = scmp.ne.s32.totalorder %s145, %s146
      %p157 = scmp.eq.s32.totalorder %s24, 0
      %p158 = por %p156, %p157
      %p159 = scmp.ne.s32.totalorder %s145, %s146
      %p160 = scmp.eq.s32.totalorder %s25, 1
      %p161 = por %p159, %p160
      %p163 = scmp.ne.s32.totalorder %s146, %s162
      %p164 = scmp.eq.s32.totalorder %s25, 0
      %p165 = por %p163, %p164
      %s166 = ssub.s32 %s26, %s38
      %p167 = scmp.eq.s32.totalorder %s166, 0
      %s169 = sadd.s32 %s168, 1
      %s170 = scalar_select %p167, %s168, %s169
      %p173 = pneg %p167
      %p174 = scmp.eq.s32.totalorder %s19, 1
      %p175 = por %p173, %p174
      %p176 = scmp.ne.s32.totalorder %s168, %s171
      %p177 = scmp.eq.s32.totalorder %s19, 0
      %p178 = por %p176, %p177
      %p179 = scmp.ne.s32.totalorder %s168, %s171
      %p180 = scmp.eq.s32.totalorder %s24, 1
      %p181 = por %p179, %p180
      %p182 = scmp.ne.s32.totalorder %s171, %s172
      %p183 = scmp.eq.s32.totalorder %s24, 0
      %p184 = por %p182, %p183
      %p185 = scmp.ne.s32.totalorder %s171, %s172
      %p186 = scmp.eq.s32.totalorder %s25, 1
      %p187 = por %p185, %p186
      %p189 = scmp.ne.s32.totalorder %s172, %s188
      %p190 = scmp.eq.s32.totalorder %s25, 0
      %p191 = por %p189, %p190
      %s192 = ssub.s32 %s26, %s38
      %p193 = scmp.eq.s32.totalorder %s192, 0
      %s195 = sadd.s32 %s194, 1
      %s196 = scalar_select %p193, %s194, %s195
      %p199 = pneg %p193
      %p200 = scmp.eq.s32.totalorder %s19, 1
      %p201 = por %p199, %p200
      %p202 = scmp.ne.s32.totalorder %s194, %s197
      %p203 = scmp.eq.s32.totalorder %s19, 0
      %p204 = por %p202, %p203
      %p205 = scmp.ne.s32.totalorder %s194, %s197
      %p206 = scmp.eq.s32.totalorder %s24, 1
      %p207 = por %p205, %p206
      %p208 = scmp.ne.s32.totalorder %s197, %s198
      %p209 = scmp.eq.s32.totalorder %s24, 0
      %p210 = por %p208, %p209
      %p211 = scmp.ne.s32.totalorder %s197, %s198
      %p212 = scmp.eq.s32.totalorder %s25, 1
      %p213 = por %p211, %p212
      %p215 = scmp.ne.s32.totalorder %s198, %s214
      %p216 = scmp.eq.s32.totalorder %s25, 0
      %p217 = por %p215, %p216
      %s218 = ssub.s32 %s26, %s38
      %p219 = scmp.eq.s32.totalorder %s218, 0
      %s221 = sadd.s32 %s220, 1
      %s222 = scalar_select %p219, %s220, %s221
      %p225 = pneg %p219
      %p226 = scmp.eq.s32.totalorder %s19, 1
      %p227 = por %p225, %p226
      %p228 = scmp.ne.s32.totalorder %s220, %s223
      %p229 = scmp.eq.s32.totalorder %s19, 0
      %p230 = por %p228, %p229
      %p231 = scmp.ne.s32.totalorder %s220, %s223
      %p232 = scmp.eq.s32.totalorder %s24, 1
      %p233 = por %p231, %p232
      %p234 = scmp.ne.s32.totalorder %s223, %s224
      %p235 = scmp.eq.s32.totalorder %s24, 0
      %p236 = por %p234, %p235
      %p237 = scmp.ne.s32.totalorder %s223, %s224
      %p238 = scmp.eq.s32.totalorder %s25, 1
      %p239 = por %p237, %p238
      %p241 = scmp.ne.s32.totalorder %s224, %s240
      %p242 = scmp.eq.s32.totalorder %s25, 0
      %p243 = por %p241, %p242
      %s245 = sadd.s32 %s244, 1
      %p248 = scmp.eq.s32.totalorder %s19, 1
      %p249 = scmp.ne.s32.totalorder %s244, %s246
      %p250 = scmp.eq.s32.totalorder %s19, 0
      %p251 = por %p249, %p250
      %p252 = scmp.ne.s32.totalorder %s244, %s246
      %p253 = scmp.eq.s32.totalorder %s24, 1
      %p254 = por %p252, %p253
      %p255 = scmp.ne.s32.totalorder %s246, %s247
      %p256 = scmp.eq.s32.totalorder %s24, 0
      %p257 = por %p255, %p256
      %p258 = scmp.ne.s32.totalorder %s246, %s247
      %p259 = scmp.eq.s32.totalorder %s25, 1
      %p260 = por %p258, %p259
      %p262 = scmp.ne.s32.totalorder %s247, %s261
      %p263 = scmp.eq.s32.totalorder %s25, 0
      %p264 = por %p262, %p263
      %p265 = scmp.le.s32.totalorder 1, %s19
      %p266 = scmp.lt.s32.totalorder %s19, 3
      %p267 = pnand %p265, %p266
      %p268 = pneg %p267
      // Predicated region
      $region9: #{tpu_custom_call.1} parent=5 // pred_check
        _
      $region10: #{tpu_custom_call.1} parent=5 // pred_check_branch
        %270 = sbr.rel (%p267) target = $region12
      $region11: #{tpu_custom_call.1} parent=5 // pred_region
        %s271 = ssub.s32 %s19, 1
        // Predicated region
        $region13: #{tpu_custom_call.1} parent=11 // pred_check
          %p272 = pneg %p57
        $region14: #{tpu_custom_call.1} parent=11 // pred_check_branch
          %274 = sbr.rel (%p272) target = $region16
        $region15: #{tpu_custom_call.1} parent=11 // pred_region
          %s275 = smul.u32 16, %s29
          %p276 = scmp.lt.s32.totalorder %s275, 15
          %s277 = scalar_select %p276, %s275, 15
          %s278 = smul.addr %s277, 8
          %s279 = scalar_lea.vmem %s0, %s278
          %s280 = smul.u32 16, %s29
        $region16: #{tpu_custom_call.1} parent=11 // pred_fallthru
          _
        // Predicated region
        $region17: #{tpu_custom_call.1} parent=11 // pred_check
          %p281 = pneg %p83
        $region18: #{tpu_custom_call.1} parent=11 // pred_check_branch
          %283 = sbr.rel (%p281) target = $region20
        $region19: #{tpu_custom_call.1} parent=11 // pred_region
          %p284 = scmp.lt.s32.totalorder %s29, 0
          %s285 = scalar_select %p284, %s29, 0
          %s286 = scalar_lea.vmem %s1, %s285
        $region20: #{tpu_custom_call.1} parent=11 // pred_fallthru
          _
        // Predicated region
        $region21: #{tpu_custom_call.1} parent=11 // pred_check
          %p287 = pneg %p132
        $region22: #{tpu_custom_call.1} parent=11 // pred_check_branch
          %289 = sbr.rel (%p287) target = $region24
        $region23: #{tpu_custom_call.1} parent=11 // pred_region
          %s291 = ssub.s32 2048, 2048
          %292 = vsyncadd [#allocation5], %s291
          %s293 = sshll.u32 [#allocation4], 4
          %s294 = int_to_ptr.vmem [resolvable:$true] %s293
          %299 = dma.hbm_to_vmem [thread:$0]  %s3, 2048, %s294, [#allocation5], 128, 128, 8
        $region24: #{tpu_custom_call.1} parent=11 // pred_fallthru
          _
      $region12: #{tpu_custom_call.1} parent=5 // pred_fallthru
        _
      %p300 = scmp.lt.s32.totalorder %s19, 2
      // Predicated region
      $region25: #{tpu_custom_call.1} parent=5 // pred_check
        %p301 = pneg %p300
      $region26: #{tpu_custom_call.1} parent=5 // pred_check_branch
        %303 = sbr.rel (%p301) target = $region28
      $region27: #{tpu_custom_call.1} parent=5 // pred_region
        // Predicated region
        $region29: #{tpu_custom_call.1} parent=27 // pred_check
          %p304 = pneg %p105
        $region30: #{tpu_custom_call.1} parent=27 // pred_check_branch
          %306 = sbr.rel (%p304) target = $region32
        $region31: #{tpu_custom_call.1} parent=27 // pred_region
          %s307 = smul.u32 16, %s27
          %p308 = scmp.lt.s32.totalorder %s26, 1
          %s309 = scalar_select %p308, %s26, 1
          %p310 = scmp.lt.s32.totalorder %s307, 15
          %s311 = scalar_select %p310, %s307, 15
          %s312 = smul.addr %s309, 16
          %s313 = sadd.s32 %s311, %s312
          %s314 = smul.addr %s313, 4
          %s315 = scalar_lea.vmem %s2, %s314
          %s316 = smul.u32 16, %s27
        $region32: #{tpu_custom_call.1} parent=27 // pred_fallthru
          _
        // Predicated region
        $region33: #{tpu_custom_call.1} parent=27 // pred_check
          %p317 = pneg %p152
        $region34: #{tpu_custom_call.1} parent=27 // pred_check_branch
          %319 = sbr.rel (%p317) target = $region36
        $region35: #{tpu_custom_call.1} parent=27 // pred_region
          %s320 = sand.u32 %s19, 1
          %s321 = scalar_lea.sflag [#allocation8], %s320
          %s322 = sand.u32 %s142, 1
          %s323 = smul.addr %s322, 64
          %s324 = scalar_lea.vmem [#allocation7], %s323
          %s326 = ssub.s32 1024, 1024
          %327 = vsyncadd %s321, %s326
          %s328 = smul.addr %s26, 16
          %s329 = smul.addr %s328, 64
          %s330 = scalar_lea.hbm %s4, %s329
          %s331 = sshll.u32 %s324, 4
          %s332 = int_to_ptr.vmem [resolvable:$true] %s331
          %337 = dma.hbm_to_vmem [thread:$0]  %s330, 1024, %s332, %s321, 64, 64, 4
        $region36: #{tpu_custom_call.1} parent=27 // pred_fallthru
          _
        // Predicated region
        $region37: #{tpu_custom_call.1} parent=27 // pred_check
          %p338 = pneg %p178
        $region38: #{tpu_custom_call.1} parent=27 // pred_check_branch
          %340 = sbr.rel (%p338) target = $region40
        $region39: #{tpu_custom_call.1} parent=27 // pred_region
          %s341 = sand.u32 %s19, 1
          %s342 = scalar_lea.sflag [#allocation8], %s341
          %s343 = sand.u32 %s168, 1
          %s344 = smul.addr %s343, 64
          %s345 = scalar_lea.vmem [#allocation9], %s344
          %s347 = ssub.s32 1024, 1024
          %348 = vsyncadd %s342, %s347
          %s349 = smul.addr %s26, 16
          %s350 = smul.addr %s349, 64
          %s351 = scalar_lea.hbm %s5, %s350
          %s352 = sshll.u32 %s345, 4
          %s353 = int_to_ptr.vmem [resolvable:$true] %s352
          %358 = dma.hbm_to_vmem [thread:$0]  %s351, 1024, %s353, %s342, 64, 64, 4
        $region40: #{tpu_custom_call.1} parent=27 // pred_fallthru
          _
        // Predicated region
        $region41: #{tpu_custom_call.1} parent=27 // pred_check
          %p359 = pneg %p204
        $region42: #{tpu_custom_call.1} parent=27 // pred_check_branch
          %361 = sbr.rel (%p359) target = $region44
        $region43: #{tpu_custom_call.1} parent=27 // pred_region
          %p362 = scmp.lt.s32.totalorder %s26, 1
          %s363 = scalar_select %p362, %s26, 1
          %s364 = smul.addr %s363, 2
          %s365 = scalar_lea.vmem %s6, %s364
        $region44: #{tpu_custom_call.1} parent=27 // pred_fallthru
          _
        // Predicated region
        $region45: #{tpu_custom_call.1} parent=27 // pred_check
          %p366 = pneg %p230
        $region46: #{tpu_custom_call.1} parent=27 // pred_check_branch
          %368 = sbr.rel (%p366) target = $region48
        $region47: #{tpu_custom_call.1} parent=27 // pred_region
          %p369 = scmp.lt.s32.totalorder %s26, 1
          %s370 = scalar_select %p369, %s26, 1
          %s371 = scalar_lea.vmem %s7, %s370
        $region48: #{tpu_custom_call.1} parent=27 // pred_fallthru
          _
      $region28: #{tpu_custom_call.1} parent=5 // pred_fallthru
        _
      %p372 = scmp.le.s32.totalorder 1, %s19
      %p373 = scmp.lt.s32.totalorder %s19, 3
      %p374 = pnand %p372, %p373
      %p375 = pneg %p374
      // Predicated region
      $region49: #{tpu_custom_call.1} parent=5 // pred_check
        _
      $region50: #{tpu_custom_call.1} parent=5 // pred_check_branch
        %377 = sbr.rel (%p374) target = $region52
      $region51: #{tpu_custom_call.1} parent=5 // pred_region
        %s378 = ssub.s32 %s19, 1
        // Predicated region
        $region53: #{tpu_custom_call.1} parent=51 // pred_check
          %p379 = pneg %p132
        $region54: #{tpu_custom_call.1} parent=51 // pred_check_branch
          %381 = sbr.rel (%p379) target = $region56
        $region55: #{tpu_custom_call.1} parent=51 // pred_region
          %382 = dma.done [#allocation5], 2048
        $region56: #{tpu_custom_call.1} parent=51 // pred_fallthru
          _
        %s383 = sand.u32 %s24, 1
        %s384 = scalar_lea.sflag [#allocation8], %s383
        %s385 = sand.u32 %s145, 1
        %s386 = smul.addr %s385, 64
        %s387 = scalar_lea.vmem [#allocation7], %s386
        // Predicated region
        $region57: #{tpu_custom_call.1} parent=51 // pred_check
          %p388 = pneg %p158
        $region58: #{tpu_custom_call.1} parent=51 // pred_check_branch
          %390 = sbr.rel (%p388) target = $region60
        $region59: #{tpu_custom_call.1} parent=51 // pred_region
          %391 = dma.done %s384, 1024
        $region60: #{tpu_custom_call.1} parent=51 // pred_fallthru
          _
        %s392 = sand.u32 %s24, 1
        %s393 = scalar_lea.sflag [#allocation8], %s392
        %s394 = sand.u32 %s171, 1
        %s395 = smul.addr %s394, 64
        %s396 = scalar_lea.vmem [#allocation9], %s395
        // Predicated region
        $region61: #{tpu_custom_call.1} parent=51 // pred_check
          %p397 = pneg %p184
        $region62: #{tpu_custom_call.1} parent=51 // pred_check_branch
          %399 = sbr.rel (%p397) target = $region64
        $region63: #{tpu_custom_call.1} parent=51 // pred_region
          %400 = dma.done %s393, 1024
        $region64: #{tpu_custom_call.1} parent=51 // pred_fallthru
          _
        %s401 = smul.u32 16, %s29
        %p402 = scmp.lt.s32.totalorder %s401, 15
        %s403 = scalar_select %p402, %s401, 15
        %s404 = smul.addr %s403, 8
        %s405 = scalar_lea.vmem %s0, %s404
        %p406 = pneg %p57
        %p407 = pneg %p54
        %p408 = scmp.lt.s32.totalorder %s29, 0
        %s409 = scalar_select %p408, %s29, 0
        %s410 = scalar_lea.vmem %s1, %s409
        %p411 = pneg %p83
        %p412 = pneg %p80
        %s413 = smul.u32 16, %s29
        %p414 = scmp.lt.s32.totalorder %s28, 1
        %s415 = scalar_select %p414, %s28, 1
        %p416 = scmp.lt.s32.totalorder %s413, 15
        %s417 = scalar_select %p416, %s413, 15
        %s418 = smul.addr %s415, 16
        %s419 = sadd.s32 %s417, %s418
        %s420 = smul.addr %s419, 4
        %s421 = scalar_lea.vmem %s2, %s420
        %p422 = pneg %p111
        %p423 = pneg %p108
        %p424 = pneg %p132
        %p425 = pneg %p129
        %s426 = sand.u32 %s24, 1
        %s427 = scalar_lea.sflag [#allocation8], %s426
        %s428 = sand.u32 %s145, 1
        %s429 = smul.addr %s428, 64
        %s430 = scalar_lea.vmem [#allocation7], %s429
        %p431 = pneg %p158
        %p432 = pneg %p155
        %s433 = sand.u32 %s24, 1
        %s434 = scalar_lea.sflag [#allocation8], %s433
        %s435 = sand.u32 %s171, 1
        %s436 = smul.addr %s435, 64
        %s437 = scalar_lea.vmem [#allocation9], %s436
        %p438 = pneg %p184
        %p439 = pneg %p181
        %p440 = scmp.lt.s32.totalorder %s28, 1
        %s441 = scalar_select %p440, %s28, 1
        %s442 = smul.addr %s441, 2
        %s443 = scalar_lea.vmem %s6, %s442
        %p444 = pneg %p210
        %p445 = pneg %p207
        %p446 = scmp.lt.s32.totalorder %s28, 1
        %s447 = scalar_select %p446, %s28, 1
        %s448 = scalar_lea.vmem %s7, %s447
        %p449 = pneg %p236
        %p450 = pneg %p233
        %p451 = pneg %p257
        %p452 = pneg %p254
        %s453 = smul.u32 16, %s29
        %p454 = scmp.lt.s32.totalorder %s453, 15
        %s455 = scalar_select %p454, %s453, 15
        %s456 = smul.addr %s455, 8
        %s457 = scalar_lea.vmem %s0, %s456
        %s458 = smul.u32 16, %s29
        %p459 = scmp.lt.s32.totalorder %s29, 0
        %s460 = scalar_select %p459, %s29, 0
        %s461 = scalar_lea.vmem %s1, %s460
        %s462 = smul.u32 16, %s29
        %p463 = scmp.lt.s32.totalorder %s28, 1
        %s464 = scalar_select %p463, %s28, 1
        %p465 = scmp.lt.s32.totalorder %s462, 15
        %s466 = scalar_select %p465, %s462, 15
        %s467 = smul.addr %s464, 16
        %s468 = sadd.s32 %s466, %s467
        %s469 = smul.addr %s468, 4
        %s470 = scalar_lea.vmem %s2, %s469
        %s471 = smul.u32 16, %s29
        %p472 = scmp.lt.s32.totalorder %s28, 1
        %s473 = scalar_select %p472, %s28, 1
        %s474 = smul.addr %s473, 2
        %s475 = scalar_lea.vmem %s6, %s474
        %p476 = scmp.lt.s32.totalorder %s28, 1
        %s477 = scalar_select %p476, %s28, 1
        %s478 = scalar_lea.vmem %s7, %s477
        %p480 = scmp.eq.s32.totalorder %s28, 0
        %p481 = scmp.eq.s32.totalorder %s29, 0
        %p482 = pnand %p480, %p481
        %p483 = pneg %p482
        // Predicated region
        $region65: #{tpu_custom_call.1} parent=51 // pred_check
          _
        $region66: #{tpu_custom_call.1} parent=51 // pred_check_branch
          %485 = sbr.rel (%p482) target = $region68
        $region67: #{tpu_custom_call.1} parent=51 // pred_region
          %v486 = vld [vmem:[#allocation4] sm:$0xff]
          %v487 = vld [vmem:[#allocation4 + $0x8] sm:$0xff]
          %v488 = vld [vmem:[#allocation4 + $0x10] sm:$0xff]
          %v489 = vld [vmem:[#allocation4 + $0x18] sm:$0xff]
          %v490 = vld [vmem:[#allocation4 + $0x20] sm:$0xff]
          %v491 = vld [vmem:[#allocation4 + $0x28] sm:$0xff]
          %v492 = vld [vmem:[#allocation4 + $0x30] sm:$0xff]
          %v493 = vld [vmem:[#allocation4 + $0x38] sm:$0xff]
          %v494 = vld [vmem:[#allocation4 + $0x40] sm:$0xff]
          %v495 = vld [vmem:[#allocation4 + $0x48] sm:$0xff]
          %v496 = vld [vmem:[#allocation4 + $0x50] sm:$0xff]
          %v497 = vld [vmem:[#allocation4 + $0x58] sm:$0xff]
          %v498 = vld [vmem:[#allocation4 + $0x60] sm:$0xff]
          %v499 = vld [vmem:[#allocation4 + $0x68] sm:$0xff]
          %v500 = vld [vmem:[#allocation4 + $0x70] sm:$0xff]
          %v501 = vld [vmem:[#allocation4 + $0x78] sm:$0xff]
          %502 = vst [vmem:[#allocation10] sm:$0xff] %v486
          %503 = vst [vmem:[#allocation10 + $0x8] sm:$0xff] %v487
          %504 = vst [vmem:[#allocation10 + $0x10] sm:$0xff] %v488
          %505 = vst [vmem:[#allocation10 + $0x18] sm:$0xff] %v489
          %506 = vst [vmem:[#allocation10 + $0x20] sm:$0xff] %v490
          %507 = vst [vmem:[#allocation10 + $0x28] sm:$0xff] %v491
          %508 = vst [vmem:[#allocation10 + $0x30] sm:$0xff] %v492
          %509 = vst [vmem:[#allocation10 + $0x38] sm:$0xff] %v493
          %510 = vst [vmem:[#allocation10 + $0x40] sm:$0xff] %v494
          %511 = vst [vmem:[#allocation10 + $0x48] sm:$0xff] %v495
          %512 = vst [vmem:[#allocation10 + $0x50] sm:$0xff] %v496
          %513 = vst [vmem:[#allocation10 + $0x58] sm:$0xff] %v497
          %514 = vst [vmem:[#allocation10 + $0x60] sm:$0xff] %v498
          %515 = vst [vmem:[#allocation10 + $0x68] sm:$0xff] %v499
          %516 = vst [vmem:[#allocation10 + $0x70] sm:$0xff] %v500
          %517 = vst [vmem:[#allocation10 + $0x78] sm:$0xff] %v501
        $region68: #{tpu_custom_call.1} parent=51 // pred_fallthru
          _
        // Predicated region
        $region69: #{tpu_custom_call.1} parent=51 // pred_check
          %p518 = pneg %p481
        $region70: #{tpu_custom_call.1} parent=51 // pred_check_branch
          %520 = sbr.rel (%p518) target = $region72
        $region71: #{tpu_custom_call.1} parent=51 // pred_region
          %521 = vst [vmem:[#allocation2] sm:$0xff] 0.0
          %522 = vst [vmem:[#allocation2 + $0x8] sm:$0xff] 0.0
          %523 = vst [vmem:[#allocation2 + $0x10] sm:$0xff] 0.0
          %524 = vst [vmem:[#allocation2 + $0x18] sm:$0xff] 0.0
          %525 = vst [vmem:[#allocation2 + $0x20] sm:$0xff] 0.0
          %526 = vst [vmem:[#allocation2 + $0x28] sm:$0xff] 0.0
          %527 = vst [vmem:[#allocation2 + $0x30] sm:$0xff] 0.0
          %528 = vst [vmem:[#allocation2 + $0x38] sm:$0xff] 0.0
          %529 = vst [vmem:[#allocation2 + $0x40] sm:$0xff] 0.0
          %530 = vst [vmem:[#allocation2 + $0x48] sm:$0xff] 0.0
          %531 = vst [vmem:[#allocation2 + $0x50] sm:$0xff] 0.0
          %532 = vst [vmem:[#allocation2 + $0x58] sm:$0xff] 0.0
          %533 = vst [vmem:[#allocation2 + $0x60] sm:$0xff] 0.0
          %534 = vst [vmem:[#allocation2 + $0x68] sm:$0xff] 0.0
          %535 = vst [vmem:[#allocation2 + $0x70] sm:$0xff] 0.0
          %536 = vst [vmem:[#allocation2 + $0x78] sm:$0xff] 0.0
          %v537 = vld [vmem:[#allocation10] sm:$0xff]
          %v538 = vld [vmem:[#allocation10 + $0x8] sm:$0xff]
          %v539 = vld [vmem:[#allocation10 + $0x10] sm:$0xff]
          %v540 = vld [vmem:[#allocation10 + $0x18] sm:$0xff]
          %v541 = vld [vmem:[#allocation10 + $0x20] sm:$0xff]
          %v542 = vld [vmem:[#allocation10 + $0x28] sm:$0xff]
          %v543 = vld [vmem:[#allocation10 + $0x30] sm:$0xff]
          %v544 = vld [vmem:[#allocation10 + $0x38] sm:$0xff]
          %v545 = vld [vmem:[#allocation10 + $0x40] sm:$0xff]
          %v546 = vld [vmem:[#allocation10 + $0x48] sm:$0xff]
          %v547 = vld [vmem:[#allocation10 + $0x50] sm:$0xff]
          %v548 = vld [vmem:[#allocation10 + $0x58] sm:$0xff]
          %v549 = vld [vmem:[#allocation10 + $0x60] sm:$0xff]
          %v550 = vld [vmem:[#allocation10 + $0x68] sm:$0xff]
          %v551 = vld [vmem:[#allocation10 + $0x70] sm:$0xff]
          %v552 = vld [vmem:[#allocation10 + $0x78] sm:$0xff]
          %v553 = vpack.c.bf16 %v538, %v537
          %v554 = vpack.c.bf16 %v540, %v539
          %v555 = vpack.c.bf16 %v542, %v541
          %v556 = vpack.c.bf16 %v544, %v543
          %v557 = vpack.c.bf16 %v546, %v545
          %v558 = vpack.c.bf16 %v548, %v547
          %v559 = vpack.c.bf16 %v550, %v549
          %v560 = vpack.c.bf16 %v552, %v551
          %561 = vst [vmem:[#allocation3] sm:$0xff] %v553
          %562 = vst [vmem:[#allocation3 + $0x8] sm:$0xff] %v554
          %563 = vst [vmem:[#allocation3 + $0x10] sm:$0xff] %v555
          %564 = vst [vmem:[#allocation3 + $0x18] sm:$0xff] %v556
          %565 = vst [vmem:[#allocation3 + $0x20] sm:$0xff] %v557
          %566 = vst [vmem:[#allocation3 + $0x28] sm:$0xff] %v558
          %567 = vst [vmem:[#allocation3 + $0x30] sm:$0xff] %v559
          %568 = vst [vmem:[#allocation3 + $0x38] sm:$0xff] %v560
        $region72: #{tpu_custom_call.1} parent=51 // pred_fallthru
          _
        %v569 = vld [vmem:[%s457] sm:$0xff]
        %v570 = vld [vmem:[%s457 + $0x8] sm:$0xff]
        %v571 = vld [vmem:[%s457 + $0x10] sm:$0xff]
        %v572 = vld [vmem:[%s457 + $0x18] sm:$0xff]
        %v573 = vld [vmem:[%s457 + $0x20] sm:$0xff]
        %v574 = vld [vmem:[%s457 + $0x28] sm:$0xff]
        %v575 = vld [vmem:[%s457 + $0x30] sm:$0xff]
        %v576 = vld [vmem:[%s457 + $0x38] sm:$0xff]
        %v577 = vld [vmem:[%s457 + $0x40] sm:$0xff]
        %v578 = vld [vmem:[%s457 + $0x48] sm:$0xff]
        %v579 = vld [vmem:[%s457 + $0x50] sm:$0xff]
        %v580 = vld [vmem:[%s457 + $0x58] sm:$0xff]
        %v581 = vld [vmem:[%s457 + $0x60] sm:$0xff]
        %v582 = vld [vmem:[%s457 + $0x68] sm:$0xff]
        %v583 = vld [vmem:[%s457 + $0x70] sm:$0xff]
        %v584 = vld [vmem:[%s457 + $0x78] sm:$0xff]
        %v585 = vld [vmem:[%s461] sm:$0x1]
        %v586 = vlaneseq
        %v587 = vand.u32 %v586, 127
        %v588 = vlaneseq
        %v589 = vshrl.u32 %v588, 7
        %v590 = vadd.s32 %v589, 8
        %v591 = vadd.s32 %v589, 16
        %v592 = vadd.s32 %v589, 24
        %v593 = vadd.s32 %v589, 32
        %v594 = vadd.s32 %v589, 40
        %v595 = vadd.s32 %v589, 48
        %v596 = vadd.s32 %v589, 56
        %v597 = vadd.s32 %v589, 64
        %v598 = vadd.s32 %v589, 72
        %v599 = vadd.s32 %v589, 80
        %v600 = vadd.s32 %v589, 88
        %v601 = vadd.s32 %v589, 96
        %v602 = vadd.s32 %v589, 104
        %v603 = vadd.s32 %v589, 112
        %v604 = vadd.s32 %v589, 120
        %605 = vset.pattern.permute.xlu0 0
        %606 = vperm.xlu0 %605, %v569
        %v607 = vpop.permute.xlu0 %606
        %608 = vset.pattern.permute.xlu0 0
        %609 = vperm.xlu0 %608, %v570
        %v610 = vpop.permute.xlu0 %609
        %611 = vset.pattern.permute.xlu0 0
        %612 = vperm.xlu0 %611, %v571
        %v613 = vpop.permute.xlu0 %612
        %614 = vset.pattern.permute.xlu0 0
        %615 = vperm.xlu0 %614, %v572
        %v616 = vpop.permute.xlu0 %615
        %617 = vset.pattern.permute.xlu0 0
        %618 = vperm.xlu0 %617, %v573
        %v619 = vpop.permute.xlu0 %618
        %620 = vset.pattern.permute.xlu0 0
        %621 = vperm.xlu0 %620, %v574
        %v622 = vpop.permute.xlu0 %621
        %623 = vset.pattern.permute.xlu0 0
        %624 = vperm.xlu0 %623, %v575
        %v625 = vpop.permute.xlu0 %624
        %626 = vset.pattern.permute.xlu0 0
        %627 = vperm.xlu0 %626, %v576
        %v628 = vpop.permute.xlu0 %627
        %629 = vset.pattern.permute.xlu0 0
        %630 = vperm.xlu0 %629, %v577
        %v631 = vpop.permute.xlu0 %630
        %632 = vset.pattern.permute.xlu0 0
        %633 = vperm.xlu0 %632, %v578
        %v634 = vpop.permute.xlu0 %633
        %635 = vset.pattern.permute.xlu0 0
        %636 = vperm.xlu0 %635, %v579
        %v637 = vpop.permute.xlu0 %636
        %638 = vset.pattern.permute.xlu0 0
        %639 = vperm.xlu0 %638, %v580
        %v640 = vpop.permute.xlu0 %639
        %641 = vset.pattern.permute.xlu0 0
        %642 = vperm.xlu0 %641, %v581
        %v643 = vpop.permute.xlu0 %642
        %644 = vset.pattern.permute.xlu0 0
        %645 = vperm.xlu0 %644, %v582
        %v646 = vpop.permute.xlu0 %645
        %647 = vset.pattern.permute.xlu0 0
        %648 = vperm.xlu0 %647, %v583
        %v649 = vpop.permute.xlu0 %648
        %650 = vset.pattern.permute.xlu0 0
        %651 = vperm.xlu0 %650, %v584
        %v652 = vpop.permute.xlu0 %651
        %vm653 = vcmp.eq.s32.totalorder %v607, %v587
        %vm654 = vcmp.eq.s32.totalorder %v610, %v587
        %vm655 = vcmp.eq.s32.totalorder %v613, %v587
        %vm656 = vcmp.eq.s32.totalorder %v616, %v587
        %vm657 = vcmp.eq.s32.totalorder %v619, %v587
        %vm658 = vcmp.eq.s32.totalorder %v622, %v587
        %vm659 = vcmp.eq.s32.totalorder %v625, %v587
        %vm660 = vcmp.eq.s32.totalorder %v628, %v587
        %vm661 = vcmp.eq.s32.totalorder %v631, %v587
        %vm662 = vcmp.eq.s32.totalorder %v634, %v587
        %vm663 = vcmp.eq.s32.totalorder %v637, %v587
        %vm664 = vcmp.eq.s32.totalorder %v640, %v587
        %vm665 = vcmp.eq.s32.totalorder %v643, %v587
        %vm666 = vcmp.eq.s32.totalorder %v646, %v587
        %vm667 = vcmp.eq.s32.totalorder %v649, %v587
        %vm668 = vcmp.eq.s32.totalorder %v652, %v587
        %v669 = vsel %vm653, 1.0, 0.0
        %v670 = vsel %vm654, 1.0, 0.0
        %v671 = vsel %vm655, 1.0, 0.0
        %v672 = vsel %vm656, 1.0, 0.0
        %v673 = vsel %vm657, 1.0, 0.0
        %v674 = vsel %vm658, 1.0, 0.0
        %v675 = vsel %vm659, 1.0, 0.0
        %v676 = vsel %vm660, 1.0, 0.0
        %v677 = vsel %vm661, 1.0, 0.0
        %v678 = vsel %vm662, 1.0, 0.0
        %v679 = vsel %vm663, 1.0, 0.0
        %v680 = vsel %vm664, 1.0, 0.0
        %v681 = vsel %vm665, 1.0, 0.0
        %v682 = vsel %vm666, 1.0, 0.0
        %v683 = vsel %vm667, 1.0, 0.0
        %v684 = vsel %vm668, 1.0, 0.0
        %v685 = vpack.c.bf16 %v670, %v669
        %v686 = vpack.c.bf16 %v672, %v671
        %v687 = vpack.c.bf16 %v674, %v673
        %v688 = vpack.c.bf16 %v676, %v675
        %v689 = vpack.c.bf16 %v678, %v677
        %v690 = vpack.c.bf16 %v680, %v679
        %v691 = vpack.c.bf16 %v682, %v681
        %v692 = vpack.c.bf16 %v684, %v683
        %v693 = vlaneseq
        %v694 = vshrl.u32 %v693, 7
        %v695 = vsub.s32 0, %v694
        %v696 = vrot.slane %v585, %v695
        %vm697 = vcmp.eq.s32.totalorder %v696, %v589
        %vm698 = vcmp.eq.s32.totalorder %v696, %v590
        %vm699 = vcmp.eq.s32.totalorder %v696, %v591
        %vm700 = vcmp.eq.s32.totalorder %v696, %v592
        %vm701 = vcmp.eq.s32.totalorder %v696, %v593
        %vm702 = vcmp.eq.s32.totalorder %v696, %v594
        %vm703 = vcmp.eq.s32.totalorder %v696, %v595
        %vm704 = vcmp.eq.s32.totalorder %v696, %v596
        %vm705 = vcmp.eq.s32.totalorder %v696, %v597
        %vm706 = vcmp.eq.s32.totalorder %v696, %v598
        %vm707 = vcmp.eq.s32.totalorder %v696, %v599
        %vm708 = vcmp.eq.s32.totalorder %v696, %v600
        %vm709 = vcmp.eq.s32.totalorder %v696, %v601
        %vm710 = vcmp.eq.s32.totalorder %v696, %v602
        %vm711 = vcmp.eq.s32.totalorder %v696, %v603
        %vm712 = vcmp.eq.s32.totalorder %v696, %v604
        %v713 = vsel %vm697, 1.0, 0.0
        %v714 = vsel %vm698, 1.0, 0.0
        %v715 = vsel %vm699, 1.0, 0.0
        %v716 = vsel %vm700, 1.0, 0.0
        %v717 = vsel %vm701, 1.0, 0.0
        %v718 = vsel %vm702, 1.0, 0.0
        %v719 = vsel %vm703, 1.0, 0.0
        %v720 = vsel %vm704, 1.0, 0.0
        %v721 = vsel %vm705, 1.0, 0.0
        %v722 = vsel %vm706, 1.0, 0.0
        %v723 = vsel %vm707, 1.0, 0.0
        %v724 = vsel %vm708, 1.0, 0.0
        %v725 = vsel %vm709, 1.0, 0.0
        %v726 = vsel %vm710, 1.0, 0.0
        %v727 = vsel %vm711, 1.0, 0.0
        %v728 = vsel %vm712, 1.0, 0.0
        %v729 = vpack.c.bf16 %v714, %v713
        %v730 = vpack.c.bf16 %v716, %v715
        %v731 = vpack.c.bf16 %v718, %v717
        %v732 = vpack.c.bf16 %v720, %v719
        %v733 = vpack.c.bf16 %v722, %v721
        %v734 = vpack.c.bf16 %v724, %v723
        %v735 = vpack.c.bf16 %v726, %v725
        %v736 = vpack.c.bf16 %v728, %v727
        %v737 = vld [vmem:[#allocation3] sm:$0xff]
        %v738 = vld [vmem:[#allocation3 + $0x8] sm:$0xff]
        %v739 = vld [vmem:[#allocation3 + $0x10] sm:$0xff]
        %v740 = vld [vmem:[#allocation3 + $0x18] sm:$0xff]
        %v741 = vld [vmem:[#allocation3 + $0x20] sm:$0xff]
        %v742 = vld [vmem:[#allocation3 + $0x28] sm:$0xff]
        %v743 = vld [vmem:[#allocation3 + $0x30] sm:$0xff]
        %v744 = vld [vmem:[#allocation3 + $0x38] sm:$0xff]
        %v745 = vld [vmem:[%s470] sm:$0xf]
        %v746 = vld [vmem:[%s470 + $0x4] sm:$0xf]
        %v747 = vld [vmem:[%s470 + $0x8] sm:$0xf]
        %v748 = vld [vmem:[%s470 + $0xc] sm:$0xf]
        %v749 = vld [vmem:[%s470 + $0x10] sm:$0xf]
        %v750 = vld [vmem:[%s470 + $0x14] sm:$0xf]
        %v751 = vld [vmem:[%s470 + $0x18] sm:$0xf]
        %v752 = vld [vmem:[%s470 + $0x1c] sm:$0xf]
        %v753 = vld [vmem:[%s470 + $0x20] sm:$0xf]
        %v754 = vld [vmem:[%s470 + $0x24] sm:$0xf]
        %v755 = vld [vmem:[%s470 + $0x28] sm:$0xf]
        %v756 = vld [vmem:[%s470 + $0x2c] sm:$0xf]
        %v757 = vld [vmem:[%s470 + $0x30] sm:$0xf]
        %v758 = vld [vmem:[%s470 + $0x34] sm:$0xf]
        %v759 = vld [vmem:[%s470 + $0x38] sm:$0xf]
        %v760 = vld [vmem:[%s470 + $0x3c] sm:$0xf]
        %v761 = vunpack.c.l.bf16 %v745
        %v762 = vunpack.c.l.bf16 %v746
        %v763 = vunpack.c.l.bf16 %v747
        %v764 = vunpack.c.l.bf16 %v748
        %v765 = vunpack.c.l.bf16 %v749
        %v766 = vunpack.c.l.bf16 %v750
        %v767 = vunpack.c.l.bf16 %v751
        %v768 = vunpack.c.l.bf16 %v752
        %v769 = vunpack.c.l.bf16 %v753
        %v770 = vunpack.c.l.bf16 %v754
        %v771 = vunpack.c.l.bf16 %v755
        %v772 = vunpack.c.l.bf16 %v756
        %v773 = vunpack.c.l.bf16 %v757
        %v774 = vunpack.c.l.bf16 %v758
        %v775 = vunpack.c.l.bf16 %v759
        %v776 = vunpack.c.l.bf16 %v760
        %777 = vmatprep.subr.bf16.mxu0 0
        %778 = vmatpush1.bf16.msra.mxu0 %v737
        %779 = vmatprep.subr.bf16.mxu0 0
        %780 = vmatpush1.bf16.msra.mxu0 %v738
        %781 = vmatprep.subr.bf16.mxu0 0
        %782 = vmatpush1.bf16.msra.mxu0 %v739
        %783 = vmatprep.subr.bf16.mxu0 0
        %784 = vmatpush1.bf16.msra.mxu0 %v740
        %785 = vmatprep.subr.bf16.mxu0 0
        %786 = vmatpush1.bf16.msra.mxu0 %v741
        %787 = vmatprep.subr.bf16.mxu0 0
        %788 = vmatpush1.bf16.msra.mxu0 %v742
        %789 = vmatprep.subr.bf16.mxu0 0
        %790 = vmatpush1.bf16.msra.mxu0 %v743
        %791 = vmatprep.subr.bf16.mxu0 0
        %792 = vmatpush1.bf16.msra.mxu0 %v744
        %793 = vmatprep.subr.bf16.mxu0 0
        %794 = vmatpush1.bf16.msra.mxu0 0
        %795 = vmatprep.subr.bf16.mxu0 0
        %796 = vmatpush1.bf16.msra.mxu0 0
        %797 = vmatprep.subr.bf16.mxu0 0
        %798 = vmatpush1.bf16.msra.mxu0 0
        %799 = vmatprep.subr.bf16.mxu0 0
        %800 = vmatpush1.bf16.msra.mxu0 0
        %801 = vmatprep.subr.bf16.mxu0 0
        %802 = vmatpush1.bf16.msra.mxu0 0
        %803 = vmatprep.subr.bf16.mxu0 0
        %804 = vmatpush1.bf16.msra.mxu0 0
        %805 = vmatprep.subr.bf16.mxu0 0
        %806 = vmatpush1.bf16.msra.mxu0 0
        %807 = vmatprep.subr.bf16.mxu0 0
        %808 = vmatpush1.bf16.msra.mxu0 0
        %809 = vmatprep.mubr.bf16.mxu0 0
        %810 = vmatmul.mubr.bf16.gmra.mrb[0].mxu0 %v685
        %v811 = vpop.f32.mrb[0].mxu0
        %v812 = vadd.f32 %v761, %v811
        %v813 = vpop.f32.mrb[0].mxu0
        %v814 = vpop.f32.mrb[0].mxu0
        %v815 = vadd.f32 %v762, %v814
        %v816 = vpop.f32.mrb[0].mxu0
        %817 = vmatprep.mubr.bf16.mxu0 0
        %818 = vmatmul.mubr.bf16.gmra.mrb[0].mxu0 %v686
        %v819 = vpop.f32.mrb[0].mxu0
        %v820 = vadd.f32 %v763, %v819
        %v821 = vpop.f32.mrb[0].mxu0
        %v822 = vpop.f32.mrb[0].mxu0
        %v823 = vadd.f32 %v764, %v822
        %v824 = vpop.f32.mrb[0].mxu0
        %825 = vmatprep.mubr.bf16.mxu0 0
        %826 = vmatmul.mubr.bf16.gmra.mrb[0].mxu0 %v687
        %v827 = vpop.f32.mrb[0].mxu0
        %v828 = vadd.f32 %v765, %v827
        %v829 = vpop.f32.mrb[0].mxu0
        %v830 = vpop.f32.mrb[0].mxu0
        %v831 = vadd.f32 %v766, %v830
        %v832 = vpop.f32.mrb[0].mxu0
        %833 = vmatprep.mubr.bf16.mxu0 0
        %834 = vmatmul.mubr.bf16.gmra.mrb[0].mxu0 %v688
        %v835 = vpop.f32.mrb[0].mxu0
        %v836 = vadd.f32 %v767, %v835
        %v837 = vpop.f32.mrb[0].mxu0
        %v838 = vpop.f32.mrb[0].mxu0
        %v839 = vadd.f32 %v768, %v838
        %v840 = vpop.f32.mrb[0].mxu0
        %841 = vmatprep.mubr.bf16.mxu0 0
        %842 = vmatmul.mubr.bf16.gmra.mrb[0].mxu0 %v689
        %v843 = vpop.f32.mrb[0].mxu0
        %v844 = vadd.f32 %v769, %v843
        %v845 = vpop.f32.mrb[0].mxu0
        %v846 = vpop.f32.mrb[0].mxu0
        %v847 = vadd.f32 %v770, %v846
        %v848 = vpop.f32.mrb[0].mxu0
        %849 = vmatprep.mubr.bf16.mxu0 0
        %850 = vmatmul.mubr.bf16.gmra.mrb[0].mxu0 %v690
        %v851 = vpop.f32.mrb[0].mxu0
        %v852 = vadd.f32 %v771, %v851
        %v853 = vpop.f32.mrb[0].mxu0
        %v854 = vpop.f32.mrb[0].mxu0
        %v855 = vadd.f32 %v772, %v854
        %v856 = vpop.f32.mrb[0].mxu0
        %857 = vmatprep.mubr.bf16.mxu0 0
        %858 = vmatmul.mubr.bf16.gmra.mrb[0].mxu0 %v691
        %v859 = vpop.f32.mrb[0].mxu0
        %v860 = vadd.f32 %v773, %v859
        %v861 = vpop.f32.mrb[0].mxu0
        %v862 = vpop.f32.mrb[0].mxu0
        %v863 = vadd.f32 %v774, %v862
        %v864 = vpop.f32.mrb[0].mxu0
        %865 = vmatprep.mubr.bf16.mxu0 0
        %866 = vmatmul.mubr.bf16.gmra.mrb[0].mxu0 %v692
        %v867 = vpop.f32.mrb[0].mxu0
        %v868 = vadd.f32 %v775, %v867
        %v869 = vpop.f32.mrb[0].mxu0
        %v870 = vpop.f32.mrb[0].mxu0
        %v871 = vadd.f32 %v776, %v870
        %v872 = vpop.f32.mrb[0].mxu0
        %873 = vdwg.mxu0
        %v874 = vmax.f32 %v812, 0.0
        %v875 = vmax.f32 %v815, 0.0
        %v876 = vmax.f32 %v820, 0.0
        %v877 = vmax.f32 %v823, 0.0
        %v878 = vmax.f32 %v828, 0.0
        %v879 = vmax.f32 %v831, 0.0
        %v880 = vmax.f32 %v836, 0.0
        %v881 = vmax.f32 %v839, 0.0
        %v882 = vmax.f32 %v844, 0.0
        %v883 = vmax.f32 %v847, 0.0
        %v884 = vmax.f32 %v852, 0.0
        %v885 = vmax.f32 %v855, 0.0
        %v886 = vmax.f32 %v860, 0.0
        %v887 = vmax.f32 %v863, 0.0
        %v888 = vmax.f32 %v868, 0.0
        %v889 = vmax.f32 %v871, 0.0
        %v890 = vld [vmem:[#allocation2] sm:$0xff]
        %v891 = vld [vmem:[#allocation2 + $0x8] sm:$0xff]
        %v892 = vld [vmem:[#allocation2 + $0x10] sm:$0xff]
        %v893 = vld [vmem:[#allocation2 + $0x18] sm:$0xff]
        %v894 = vld [vmem:[#allocation2 + $0x20] sm:$0xff]
        %v895 = vld [vmem:[#allocation2 + $0x28] sm:$0xff]
        %v896 = vld [vmem:[#allocation2 + $0x30] sm:$0xff]
        %v897 = vld [vmem:[#allocation2 + $0x38] sm:$0xff]
        %v898 = vld [vmem:[#allocation2 + $0x40] sm:$0xff]
        %v899 = vld [vmem:[#allocation2 + $0x48] sm:$0xff]
        %v900 = vld [vmem:[#allocation2 + $0x50] sm:$0xff]
        %v901 = vld [vmem:[#allocation2 + $0x58] sm:$0xff]
        %v902 = vld [vmem:[#allocation2 + $0x60] sm:$0xff]
        %v903 = vld [vmem:[#allocation2 + $0x68] sm:$0xff]
        %v904 = vld [vmem:[#allocation2 + $0x70] sm:$0xff]
        %v905 = vld [vmem:[#allocation2 + $0x78] sm:$0xff]
        %v906 = vpack.c.bf16 %v875, %v874
        %v907 = vpack.c.bf16 %v877, %v876
        %v908 = vpack.c.bf16 %v879, %v878
        %v909 = vpack.c.bf16 %v881, %v880
        %v910 = vpack.c.bf16 %v883, %v882
        %v911 = vpack.c.bf16 %v885, %v884
        %v912 = vpack.c.bf16 %v887, %v886
        %v913 = vpack.c.bf16 %v889, %v888
        %914 = vmatprep.subr.bf16.mxu0 0
        %915 = vmatpush1.bf16.msra.mxu0 %v906
        %916 = vmatprep.subr.bf16.mxu0 0
        %917 = vmatpush1.bf16.msra.mxu0 %v907
        %918 = vmatprep.subr.bf16.mxu0 0
        %919 = vmatpush1.bf16.msra.mxu0 %v908
        %920 = vmatprep.subr.bf16.mxu0 0
        %921 = vmatpush1.bf16.msra.mxu0 %v909
        %922 = vmatprep.subr.bf16.mxu0 0
        %923 = vmatpush1.bf16.msra.mxu0 %v910
        %924 = vmatprep.subr.bf16.mxu0 0
        %925 = vmatpush1.bf16.msra.mxu0 %v911
        %926 = vmatprep.subr.bf16.mxu0 0
        %927 = vmatpush1.bf16.msra.mxu0 %v912
        %928 = vmatprep.subr.bf16.mxu0 0
        %929 = vmatpush1.bf16.msra.mxu0 %v913
        %930 = vmatprep.subr.bf16.mxu0 0
        %931 = vmatpush1.bf16.msra.mxu0 0
        %932 = vmatprep.subr.bf16.mxu0 0
        %933 = vmatpush1.bf16.msra.mxu0 0
        %934 = vmatprep.subr.bf16.mxu0 0
        %935 = vmatpush1.bf16.msra.mxu0 0
        %936 = vmatprep.subr.bf16.mxu0 0
        %937 = vmatpush1.bf16.msra.mxu0 0
        %938 = vmatprep.subr.bf16.mxu0 0
        %939 = vmatpush1.bf16.msra.mxu0 0
        %940 = vmatprep.subr.bf16.mxu0 0
        %941 = vmatpush1.bf16.msra.mxu0 0
        %942 = vmatprep.subr.bf16.mxu0 0
        %943 = vmatpush1.bf16.msra.mxu0 0
        %944 = vmatprep.subr.bf16.mxu0 0
        %945 = vmatpush1.bf16.msra.mxu0 0
        %946 = vmatprep.mubr.bf16.mxu0 0
        %947 = vmatmul.mubr.bf16.gmra.mrb[0].mxu0 %v729
        %v948 = vpop.f32.mrb[0].mxu0
        %v949 = vadd.f32 0.0, %v948
        %v950 = vpop.f32.mrb[0].mxu0
        %v951 = vpop.f32.mrb[0].mxu0
        %v952 = vadd.f32 0.0, %v951
        %v953 = vpop.f32.mrb[0].mxu0
        %954 = vmatprep.mubr.bf16.mxu0 0
        %955 = vmatmul.mubr.bf16.gmra.mrb[0].mxu0 %v730
        %v956 = vpop.f32.mrb[0].mxu0
        %v957 = vadd.f32 0.0, %v956
        %v958 = vpop.f32.mrb[0].mxu0
        %v959 = vpop.f32.mrb[0].mxu0
        %v960 = vadd.f32 0.0, %v959
        %v961 = vpop.f32.mrb[0].mxu0
        %962 = vmatprep.mubr.bf16.mxu0 0
        %963 = vmatmul.mubr.bf16.gmra.mrb[0].mxu0 %v731
        %v964 = vpop.f32.mrb[0].mxu0
        %v965 = vadd.f32 0.0, %v964
        %v966 = vpop.f32.mrb[0].mxu0
        %v967 = vpop.f32.mrb[0].mxu0
        %v968 = vadd.f32 0.0, %v967
        %v969 = vpop.f32.mrb[0].mxu0
        %970 = vmatprep.mubr.bf16.mxu0 0
        %971 = vmatmul.mubr.bf16.gmra.mrb[0].mxu0 %v732
        %v972 = vpop.f32.mrb[0].mxu0
        %v973 = vadd.f32 0.0, %v972
        %v974 = vpop.f32.mrb[0].mxu0
        %v975 = vpop.f32.mrb[0].mxu0
        %v976 = vadd.f32 0.0, %v975
        %v977 = vpop.f32.mrb[0].mxu0
        %978 = vmatprep.mubr.bf16.mxu0 0
        %979 = vmatmul.mubr.bf16.gmra.mrb[0].mxu0 %v733
        %v980 = vpop.f32.mrb[0].mxu0
        %v981 = vadd.f32 0.0, %v980
        %v982 = vpop.f32.mrb[0].mxu0
        %v983 = vpop.f32.mrb[0].mxu0
        %v984 = vadd.f32 0.0, %v983
        %v985 = vpop.f32.mrb[0].mxu0
        %986 = vmatprep.mubr.bf16.mxu0 0
        %987 = vmatmul.mubr.bf16.gmra.mrb[0].mxu0 %v734
        %v988 = vpop.f32.mrb[0].mxu0
        %v989 = vadd.f32 0.0, %v988
        %v990 = vpop.f32.mrb[0].mxu0
        %v991 = vpop.f32.mrb[0].mxu0
        %v992 = vadd.f32 0.0, %v991
        %v993 = vpop.f32.mrb[0].mxu0
        %994 = vmatprep.mubr.bf16.mxu0 0
        %995 = vmatmul.mubr.bf16.gmra.mrb[0].mxu0 %v735
        %v996 = vpop.f32.mrb[0].mxu0
        %v997 = vadd.f32 0.0, %v996
        %v998 = vpop.f32.mrb[0].mxu0
        %v999 = vpop.f32.mrb[0].mxu0
        %v1000 = vadd.f32 0.0, %v999
        %v1001 = vpop.f32.mrb[0].mxu0
        %1002 = vmatprep.mubr.bf16.mxu0 0
        %1003 = vmatmul.mubr.bf16.gmra.mrb[0].mxu0 %v736
        %v1004 = vpop.f32.mrb[0].mxu0
        %v1005 = vadd.f32 0.0, %v1004
        %v1006 = vpop.f32.mrb[0].mxu0
        %v1007 = vpop.f32.mrb[0].mxu0
        %v1008 = vadd.f32 0.0, %v1007
        %v1009 = vpop.f32.mrb[0].mxu0
        %1010 = vdwg.mxu0
        %v1011 = vadd.f32 %v890, %v949
        %v1012 = vadd.f32 %v891, %v952
        %v1013 = vadd.f32 %v892, %v957
        %v1014 = vadd.f32 %v893, %v960
        %v1015 = vadd.f32 %v894, %v965
        %v1016 = vadd.f32 %v895, %v968
        %v1017 = vadd.f32 %v896, %v973
        %v1018 = vadd.f32 %v897, %v976
        %v1019 = vadd.f32 %v898, %v981
        %v1020 = vadd.f32 %v899, %v984
        %v1021 = vadd.f32 %v900, %v989
        %v1022 = vadd.f32 %v901, %v992
        %v1023 = vadd.f32 %v902, %v997
        %v1024 = vadd.f32 %v903, %v1000
        %v1025 = vadd.f32 %v904, %v1005
        %v1026 = vadd.f32 %v905, %v1008
        %1027 = vst [vmem:[#allocation2] sm:$0xff] %v1011
        %1028 = vst [vmem:[#allocation2 + $0x8] sm:$0xff] %v1012
        %1029 = vst [vmem:[#allocation2 + $0x10] sm:$0xff] %v1013
        %1030 = vst [vmem:[#allocation2 + $0x18] sm:$0xff] %v1014
        %1031 = vst [vmem:[#allocation2 + $0x20] sm:$0xff] %v1015
        %1032 = vst [vmem:[#allocation2 + $0x28] sm:$0xff] %v1016
        %1033 = vst [vmem:[#allocation2 + $0x30] sm:$0xff] %v1017
        %1034 = vst [vmem:[#allocation2 + $0x38] sm:$0xff] %v1018
        %1035 = vst [vmem:[#allocation2 + $0x40] sm:$0xff] %v1019
        %1036 = vst [vmem:[#allocation2 + $0x48] sm:$0xff] %v1020
        %1037 = vst [vmem:[#allocation2 + $0x50] sm:$0xff] %v1021
        %1038 = vst [vmem:[#allocation2 + $0x58] sm:$0xff] %v1022
        %1039 = vst [vmem:[#allocation2 + $0x60] sm:$0xff] %v1023
        %1040 = vst [vmem:[#allocation2 + $0x68] sm:$0xff] %v1024
        %1041 = vst [vmem:[#allocation2 + $0x70] sm:$0xff] %v1025
        %1042 = vst [vmem:[#allocation2 + $0x78] sm:$0xff] %v1026
        // Predicated region
        $region73: #{tpu_custom_call.1} parent=51 // pred_check
          %p1043 = pneg %p481
        $region74: #{tpu_custom_call.1} parent=51 // pred_check_branch
          %1045 = sbr.rel (%p1043) target = $region76
        $region75: #{tpu_custom_call.1} parent=51 // pred_region
          %v1046 = vld [vmem:[%s478] sm:$0x1]
          %v1047 = vld [vmem:[#allocation10] sm:$0xff]
          %v1048 = vld [vmem:[#allocation10 + $0x8] sm:$0xff]
          %v1049 = vld [vmem:[#allocation10 + $0x10] sm:$0xff]
          %v1050 = vld [vmem:[#allocation10 + $0x18] sm:$0xff]
          %v1051 = vld [vmem:[#allocation10 + $0x20] sm:$0xff]
          %v1052 = vld [vmem:[#allocation10 + $0x28] sm:$0xff]
          %v1053 = vld [vmem:[#allocation10 + $0x30] sm:$0xff]
          %v1054 = vld [vmem:[#allocation10 + $0x38] sm:$0xff]
          %v1055 = vld [vmem:[#allocation10 + $0x40] sm:$0xff]
          %v1056 = vld [vmem:[#allocation10 + $0x48] sm:$0xff]
          %v1057 = vld [vmem:[#allocation10 + $0x50] sm:$0xff]
          %v1058 = vld [vmem:[#allocation10 + $0x58] sm:$0xff]
          %v1059 = vld [vmem:[#allocation10 + $0x60] sm:$0xff]
          %v1060 = vld [vmem:[#allocation10 + $0x68] sm:$0xff]
          %v1061 = vld [vmem:[#allocation10 + $0x70] sm:$0xff]
          %v1062 = vld [vmem:[#allocation10 + $0x78] sm:$0xff]
          %v1064 = vlaneseq
          %v1065 = vshrl.u32 %v1064, 7
          %v1066 = vsub.s32 0, %v1065
          %v1067 = vrot.slane %v1046, %v1066
          %v1069 = vmul.f32 %v1067, %v1047
          %v1070 = vmul.f32 %v1067, %v1048
          %v1071 = vmul.f32 %v1067, %v1049
          %v1072 = vmul.f32 %v1067, %v1050
          %v1073 = vmul.f32 %v1067, %v1051
          %v1074 = vmul.f32 %v1067, %v1052
          %v1075 = vmul.f32 %v1067, %v1053
          %v1076 = vmul.f32 %v1067, %v1054
          %v1077 = vmul.f32 %v1067, %v1055
          %v1078 = vmul.f32 %v1067, %v1056
          %v1079 = vmul.f32 %v1067, %v1057
          %v1080 = vmul.f32 %v1067, %v1058
          %v1081 = vmul.f32 %v1067, %v1059
          %v1082 = vmul.f32 %v1067, %v1060
          %v1083 = vmul.f32 %v1067, %v1061
          %v1084 = vmul.f32 %v1067, %v1062
          %v1085 = vld [vmem:[#allocation2] sm:$0xff]
          %v1086 = vld [vmem:[#allocation2 + $0x8] sm:$0xff]
          %v1087 = vld [vmem:[#allocation2 + $0x10] sm:$0xff]
          %v1088 = vld [vmem:[#allocation2 + $0x18] sm:$0xff]
          %v1089 = vld [vmem:[#allocation2 + $0x20] sm:$0xff]
          %v1090 = vld [vmem:[#allocation2 + $0x28] sm:$0xff]
          %v1091 = vld [vmem:[#allocation2 + $0x30] sm:$0xff]
          %v1092 = vld [vmem:[#allocation2 + $0x38] sm:$0xff]
          %v1093 = vld [vmem:[#allocation2 + $0x40] sm:$0xff]
          %v1094 = vld [vmem:[#allocation2 + $0x48] sm:$0xff]
          %v1095 = vld [vmem:[#allocation2 + $0x50] sm:$0xff]
          %v1096 = vld [vmem:[#allocation2 + $0x58] sm:$0xff]
          %v1097 = vld [vmem:[#allocation2 + $0x60] sm:$0xff]
          %v1098 = vld [vmem:[#allocation2 + $0x68] sm:$0xff]
          %v1099 = vld [vmem:[#allocation2 + $0x70] sm:$0xff]
          %v1100 = vld [vmem:[#allocation2 + $0x78] sm:$0xff]
          %v1101 = vadd.f32 %v1069, %v1085
          %v1102 = vadd.f32 %v1070, %v1086
          %v1103 = vadd.f32 %v1071, %v1087
          %v1104 = vadd.f32 %v1072, %v1088
          %v1105 = vadd.f32 %v1073, %v1089
          %v1106 = vadd.f32 %v1074, %v1090
          %v1107 = vadd.f32 %v1075, %v1091
          %v1108 = vadd.f32 %v1076, %v1092
          %v1109 = vadd.f32 %v1077, %v1093
          %v1110 = vadd.f32 %v1078, %v1094
          %v1111 = vadd.f32 %v1079, %v1095
          %v1112 = vadd.f32 %v1080, %v1096
          %v1113 = vadd.f32 %v1081, %v1097
          %v1114 = vadd.f32 %v1082, %v1098
          %v1115 = vadd.f32 %v1083, %v1099
          %v1116 = vadd.f32 %v1084, %v1100
          %v1117 = vld [vmem:[%s475] sm:$0x3]
          %v1118 = vpack.c.bf16 %v1102, %v1101
          %v1119 = vpack.c.bf16 %v1104, %v1103
          %v1120 = vpack.c.bf16 %v1106, %v1105
          %v1121 = vpack.c.bf16 %v1108, %v1107
          %v1122 = vpack.c.bf16 %v1110, %v1109
          %v1123 = vpack.c.bf16 %v1112, %v1111
          %v1124 = vpack.c.bf16 %v1114, %v1113
          %v1125 = vpack.c.bf16 %v1116, %v1115
          %v1126 = vld [vmem:[%s387] sm:$0xf]
          %v1127 = vld [vmem:[%s387 + $0x4] sm:$0xf]
          %v1128 = vld [vmem:[%s387 + $0x8] sm:$0xf]
          %v1129 = vld [vmem:[%s387 + $0xc] sm:$0xf]
          %v1130 = vld [vmem:[%s387 + $0x10] sm:$0xf]
          %v1131 = vld [vmem:[%s387 + $0x14] sm:$0xf]
          %v1132 = vld [vmem:[%s387 + $0x18] sm:$0xf]
          %v1133 = vld [vmem:[%s387 + $0x1c] sm:$0xf]
          %v1134 = vld [vmem:[%s387 + $0x20] sm:$0xf]
          %v1135 = vld [vmem:[%s387 + $0x24] sm:$0xf]
          %v1136 = vld [vmem:[%s387 + $0x28] sm:$0xf]
          %v1137 = vld [vmem:[%s387 + $0x2c] sm:$0xf]
          %v1138 = vld [vmem:[%s387 + $0x30] sm:$0xf]
          %v1139 = vld [vmem:[%s387 + $0x34] sm:$0xf]
          %v1140 = vld [vmem:[%s387 + $0x38] sm:$0xf]
          %v1141 = vld [vmem:[%s387 + $0x3c] sm:$0xf]
          %v1142 = vlaneseq
          %v1143 = vshrl.u32 %v1142, 7
          %v1144 = vsub.s32 0, %v1143
          %v1145 = vrot.slane %v1117, %v1144
          %v1162 = vunpack.c.l.b16 %v1126
          %v1163 = vunpack.c.l.b16 %v1127
          %v1164 = vunpack.c.l.b16 %v1128
          %v1165 = vunpack.c.l.b16 %v1129
          %v1166 = vunpack.c.l.b16 %v1130
          %v1167 = vunpack.c.l.b16 %v1131
          %v1168 = vunpack.c.l.b16 %v1132
          %v1169 = vunpack.c.l.b16 %v1133
          %v1170 = vunpack.c.l.b16 %v1134
          %v1171 = vunpack.c.l.b16 %v1135
          %v1172 = vunpack.c.l.b16 %v1136
          %v1173 = vunpack.c.l.b16 %v1137
          %v1174 = vunpack.c.l.b16 %v1138
          %v1175 = vunpack.c.l.b16 %v1139
          %v1176 = vunpack.c.l.b16 %v1140
          %v1177 = vunpack.c.l.b16 %v1141
          %v1178 = vpack.c.b16 %v1163, %v1162
          %v1179 = vpack.c.b16 %v1165, %v1164
          %v1180 = vpack.c.b16 %v1167, %v1166
          %v1181 = vpack.c.b16 %v1169, %v1168
          %v1182 = vpack.c.b16 %v1171, %v1170
          %v1183 = vpack.c.b16 %v1173, %v1172
          %v1184 = vpack.c.b16 %v1175, %v1174
          %v1185 = vpack.c.b16 %v1177, %v1176
          %1194 = vmatprep.subr.bf16.mxu0 0
          %1195 = vmatpush1.bf16.msra.mxu0 %v1178
          %1196 = vmatprep.subr.bf16.mxu0 0
          %1197 = vmatpush1.bf16.msra.mxu0 %v1179
          %1198 = vmatprep.subr.bf16.mxu0 0
          %1199 = vmatpush1.bf16.msra.mxu0 %v1180
          %1200 = vmatprep.subr.bf16.mxu0 0
          %1201 = vmatpush1.bf16.msra.mxu0 %v1181
          %1202 = vmatprep.subr.bf16.mxu0 0
          %1203 = vmatpush1.bf16.msra.mxu0 %v1182
          %1204 = vmatprep.subr.bf16.mxu0 0
          %1205 = vmatpush1.bf16.msra.mxu0 %v1183
          %1206 = vmatprep.subr.bf16.mxu0 0
          %1207 = vmatpush1.bf16.msra.mxu0 %v1184
          %1208 = vmatprep.subr.bf16.mxu0 0
          %1209 = vmatpush1.bf16.msra.mxu0 %v1185
          %1210 = vmatprep.subr.bf16.mxu0 0
          %1211 = vmatpush1.bf16.msra.mxu0 0
          %1212 = vmatprep.subr.bf16.mxu0 0
          %1213 = vmatpush1.bf16.msra.mxu0 0
          %1214 = vmatprep.subr.bf16.mxu0 0
          %1215 = vmatpush1.bf16.msra.mxu0 0
          %1216 = vmatprep.subr.bf16.mxu0 0
          %1217 = vmatpush1.bf16.msra.mxu0 0
          %1218 = vmatprep.subr.bf16.mxu0 0
          %1219 = vmatpush1.bf16.msra.mxu0 0
          %1220 = vmatprep.subr.bf16.mxu0 0
          %1221 = vmatpush1.bf16.msra.mxu0 0
          %1222 = vmatprep.subr.bf16.mxu0 0
          %1223 = vmatpush1.bf16.msra.mxu0 0
          %1224 = vmatprep.subr.bf16.mxu0 0
          %1225 = vmatpush1.bf16.msra.mxu0 0
          %1226 = vmatprep.mubr.bf16.mxu0 0
          %1227 = vmatmul.mubr.bf16.gmra.mrb[0].mxu0 %v1118
          %v1228 = vpop.f32.mrb[0].mxu0
          %v1229 = vadd.f32 %v1145, %v1228
          %v1230 = vpop.f32.mrb[0].mxu0
          %v1231 = vpop.f32.mrb[0].mxu0
          %v1232 = vadd.f32 %v1145, %v1231
          %v1233 = vpop.f32.mrb[0].mxu0
          %1234 = vmatprep.mubr.bf16.mxu0 0
          %1235 = vmatmul.mubr.bf16.gmra.mrb[0].mxu0 %v1119
          %v1236 = vpop.f32.mrb[0].mxu0
          %v1237 = vadd.f32 %v1145, %v1236
          %v1238 = vpop.f32.mrb[0].mxu0
          %v1239 = vpop.f32.mrb[0].mxu0
          %v1240 = vadd.f32 %v1145, %v1239
          %v1241 = vpop.f32.mrb[0].mxu0
          %1242 = vmatprep.mubr.bf16.mxu0 0
          %1243 = vmatmul.mubr.bf16.gmra.mrb[0].mxu0 %v1120
          %v1244 = vpop.f32.mrb[0].mxu0
          %v1245 = vadd.f32 %v1145, %v1244
          %v1246 = vpop.f32.mrb[0].mxu0
          %v1247 = vpop.f32.mrb[0].mxu0
          %v1248 = vadd.f32 %v1145, %v1247
          %v1249 = vpop.f32.mrb[0].mxu0
          %1250 = vmatprep.mubr.bf16.mxu0 0
          %1251 = vmatmul.mubr.bf16.gmra.mrb[0].mxu0 %v1121
          %v1252 = vpop.f32.mrb[0].mxu0
          %v1253 = vadd.f32 %v1145, %v1252
          %v1254 = vpop.f32.mrb[0].mxu0
          %v1255 = vpop.f32.mrb[0].mxu0
          %v1256 = vadd.f32 %v1145, %v1255
          %v1257 = vpop.f32.mrb[0].mxu0
          %1258 = vmatprep.mubr.bf16.mxu0 0
          %1259 = vmatmul.mubr.bf16.gmra.mrb[0].mxu0 %v1122
          %v1260 = vpop.f32.mrb[0].mxu0
          %v1261 = vadd.f32 %v1145, %v1260
          %v1262 = vpop.f32.mrb[0].mxu0
          %v1263 = vpop.f32.mrb[0].mxu0
          %v1264 = vadd.f32 %v1145, %v1263
          %v1265 = vpop.f32.mrb[0].mxu0
          %1266 = vmatprep.mubr.bf16.mxu0 0
          %1267 = vmatmul.mubr.bf16.gmra.mrb[0].mxu0 %v1123
          %v1268 = vpop.f32.mrb[0].mxu0
          %v1269 = vadd.f32 %v1145, %v1268
          %v1270 = vpop.f32.mrb[0].mxu0
          %v1271 = vpop.f32.mrb[0].mxu0
          %v1272 = vadd.f32 %v1145, %v1271
          %v1273 = vpop.f32.mrb[0].mxu0
          %1274 = vmatprep.mubr.bf16.mxu0 0
          %1275 = vmatmul.mubr.bf16.gmra.mrb[0].mxu0 %v1124
          %v1276 = vpop.f32.mrb[0].mxu0
          %v1277 = vadd.f32 %v1145, %v1276
          %v1278 = vpop.f32.mrb[0].mxu0
          %v1279 = vpop.f32.mrb[0].mxu0
          %v1280 = vadd.f32 %v1145, %v1279
          %v1281 = vpop.f32.mrb[0].mxu0
          %1282 = vmatprep.mubr.bf16.mxu0 0
          %1283 = vmatmul.mubr.bf16.gmra.mrb[0].mxu0 %v1125
          %v1284 = vpop.f32.mrb[0].mxu0
          %v1285 = vadd.f32 %v1145, %v1284
          %v1286 = vpop.f32.mrb[0].mxu0
          %v1287 = vpop.f32.mrb[0].mxu0
          %v1288 = vadd.f32 %v1145, %v1287
          %v1289 = vpop.f32.mrb[0].mxu0
          %1290 = vdwg.mxu0
          %v1291 = vmax.f32 %v1229, 0.0
          %v1292 = vmax.f32 %v1232, 0.0
          %v1293 = vmax.f32 %v1237, 0.0
          %v1294 = vmax.f32 %v1240, 0.0
          %v1295 = vmax.f32 %v1245, 0.0
          %v1296 = vmax.f32 %v1248, 0.0
          %v1297 = vmax.f32 %v1253, 0.0
          %v1298 = vmax.f32 %v1256, 0.0
          %v1299 = vmax.f32 %v1261, 0.0
          %v1300 = vmax.f32 %v1264, 0.0
          %v1301 = vmax.f32 %v1269, 0.0
          %v1302 = vmax.f32 %v1272, 0.0
          %v1303 = vmax.f32 %v1277, 0.0
          %v1304 = vmax.f32 %v1280, 0.0
          %v1305 = vmax.f32 %v1285, 0.0
          %v1306 = vmax.f32 %v1288, 0.0
          %v1307 = vpack.c.bf16 %v1292, %v1291
          %v1308 = vpack.c.bf16 %v1294, %v1293
          %v1309 = vpack.c.bf16 %v1296, %v1295
          %v1310 = vpack.c.bf16 %v1298, %v1297
          %v1311 = vpack.c.bf16 %v1300, %v1299
          %v1312 = vpack.c.bf16 %v1302, %v1301
          %v1313 = vpack.c.bf16 %v1304, %v1303
          %v1314 = vpack.c.bf16 %v1306, %v1305
          %v1315 = vld [vmem:[%s396] sm:$0xf]
          %v1316 = vld [vmem:[%s396 + $0x4] sm:$0xf]
          %v1317 = vld [vmem:[%s396 + $0x8] sm:$0xf]
          %v1318 = vld [vmem:[%s396 + $0xc] sm:$0xf]
          %v1319 = vld [vmem:[%s396 + $0x10] sm:$0xf]
          %v1320 = vld [vmem:[%s396 + $0x14] sm:$0xf]
          %v1321 = vld [vmem:[%s396 + $0x18] sm:$0xf]
          %v1322 = vld [vmem:[%s396 + $0x1c] sm:$0xf]
          %v1323 = vld [vmem:[%s396 + $0x20] sm:$0xf]
          %v1324 = vld [vmem:[%s396 + $0x24] sm:$0xf]
          %v1325 = vld [vmem:[%s396 + $0x28] sm:$0xf]
          %v1326 = vld [vmem:[%s396 + $0x2c] sm:$0xf]
          %v1327 = vld [vmem:[%s396 + $0x30] sm:$0xf]
          %v1328 = vld [vmem:[%s396 + $0x34] sm:$0xf]
          %v1329 = vld [vmem:[%s396 + $0x38] sm:$0xf]
          %v1330 = vld [vmem:[%s396 + $0x3c] sm:$0xf]
          %v1331 = vlaneseq
          %v1332 = vshrl.u32 %v1331, 7
          %v1333 = vsub.s32 1, %v1332
          %v1334 = vrot.slane %v1117, %v1333
          %v1351 = vunpack.c.l.b16 %v1315
          %v1352 = vunpack.c.l.b16 %v1316
          %v1353 = vunpack.c.l.b16 %v1317
          %v1354 = vunpack.c.l.b16 %v1318
          %v1355 = vunpack.c.l.b16 %v1319
          %v1356 = vunpack.c.l.b16 %v1320
          %v1357 = vunpack.c.l.b16 %v1321
          %v1358 = vunpack.c.l.b16 %v1322
          %v1359 = vunpack.c.l.b16 %v1323
          %v1360 = vunpack.c.l.b16 %v1324
          %v1361 = vunpack.c.l.b16 %v1325
          %v1362 = vunpack.c.l.b16 %v1326
          %v1363 = vunpack.c.l.b16 %v1327
          %v1364 = vunpack.c.l.b16 %v1328
          %v1365 = vunpack.c.l.b16 %v1329
          %v1366 = vunpack.c.l.b16 %v1330
          %v1367 = vpack.c.b16 %v1352, %v1351
          %v1368 = vpack.c.b16 %v1354, %v1353
          %v1369 = vpack.c.b16 %v1356, %v1355
          %v1370 = vpack.c.b16 %v1358, %v1357
          %v1371 = vpack.c.b16 %v1360, %v1359
          %v1372 = vpack.c.b16 %v1362, %v1361
          %v1373 = vpack.c.b16 %v1364, %v1363
          %v1374 = vpack.c.b16 %v1366, %v1365
          %1383 = vmatprep.subr.bf16.mxu0 0
          %1384 = vmatpush1.bf16.msra.mxu0 %v1367
          %1385 = vmatprep.subr.bf16.mxu0 0
          %1386 = vmatpush1.bf16.msra.mxu0 %v1368
          %1387 = vmatprep.subr.bf16.mxu0 0
          %1388 = vmatpush1.bf16.msra.mxu0 %v1369
          %1389 = vmatprep.subr.bf16.mxu0 0
          %1390 = vmatpush1.bf16.msra.mxu0 %v1370
          %1391 = vmatprep.subr.bf16.mxu0 0
          %1392 = vmatpush1.bf16.msra.mxu0 %v1371
          %1393 = vmatprep.subr.bf16.mxu0 0
          %1394 = vmatpush1.bf16.msra.mxu0 %v1372
          %1395 = vmatprep.subr.bf16.mxu0 0
          %1396 = vmatpush1.bf16.msra.mxu0 %v1373
          %1397 = vmatprep.subr.bf16.mxu0 0
          %1398 = vmatpush1.bf16.msra.mxu0 %v1374
          %1399 = vmatprep.subr.bf16.mxu0 0
          %1400 = vmatpush1.bf16.msra.mxu0 0
          %1401 = vmatprep.subr.bf16.mxu0 0
          %1402 = vmatpush1.bf16.msra.mxu0 0
          %1403 = vmatprep.subr.bf16.mxu0 0
          %1404 = vmatpush1.bf16.msra.mxu0 0
          %1405 = vmatprep.subr.bf16.mxu0 0
          %1406 = vmatpush1.bf16.msra.mxu0 0
          %1407 = vmatprep.subr.bf16.mxu0 0
          %1408 = vmatpush1.bf16.msra.mxu0 0
          %1409 = vmatprep.subr.bf16.mxu0 0
          %1410 = vmatpush1.bf16.msra.mxu0 0
          %1411 = vmatprep.subr.bf16.mxu0 0
          %1412 = vmatpush1.bf16.msra.mxu0 0
          %1413 = vmatprep.subr.bf16.mxu0 0
          %1414 = vmatpush1.bf16.msra.mxu0 0
          %1415 = vmatprep.mubr.bf16.mxu0 0
          %1416 = vmatmul.mubr.bf16.gmra.mrb[0].mxu0 %v1307
          %v1417 = vpop.f32.mrb[0].mxu0
          %v1418 = vadd.f32 %v1334, %v1417
          %v1419 = vpop.f32.mrb[0].mxu0
          %v1420 = vpop.f32.mrb[0].mxu0
          %v1421 = vadd.f32 %v1334, %v1420
          %v1422 = vpop.f32.mrb[0].mxu0
          %1423 = vmatprep.mubr.bf16.mxu0 0
          %1424 = vmatmul.mubr.bf16.gmra.mrb[0].mxu0 %v1308
          %v1425 = vpop.f32.mrb[0].mxu0
          %v1426 = vadd.f32 %v1334, %v1425
          %v1427 = vpop.f32.mrb[0].mxu0
          %v1428 = vpop.f32.mrb[0].mxu0
          %v1429 = vadd.f32 %v1334, %v1428
          %v1430 = vpop.f32.mrb[0].mxu0
          %1431 = vmatprep.mubr.bf16.mxu0 0
          %1432 = vmatmul.mubr.bf16.gmra.mrb[0].mxu0 %v1309
          %v1433 = vpop.f32.mrb[0].mxu0
          %v1434 = vadd.f32 %v1334, %v1433
          %v1435 = vpop.f32.mrb[0].mxu0
          %v1436 = vpop.f32.mrb[0].mxu0
          %v1437 = vadd.f32 %v1334, %v1436
          %v1438 = vpop.f32.mrb[0].mxu0
          %1439 = vmatprep.mubr.bf16.mxu0 0
          %1440 = vmatmul.mubr.bf16.gmra.mrb[0].mxu0 %v1310
          %v1441 = vpop.f32.mrb[0].mxu0
          %v1442 = vadd.f32 %v1334, %v1441
          %v1443 = vpop.f32.mrb[0].mxu0
          %v1444 = vpop.f32.mrb[0].mxu0
          %v1445 = vadd.f32 %v1334, %v1444
          %v1446 = vpop.f32.mrb[0].mxu0
          %1447 = vmatprep.mubr.bf16.mxu0 0
          %1448 = vmatmul.mubr.bf16.gmra.mrb[0].mxu0 %v1311
          %v1449 = vpop.f32.mrb[0].mxu0
          %v1450 = vadd.f32 %v1334, %v1449
          %v1451 = vpop.f32.mrb[0].mxu0
          %v1452 = vpop.f32.mrb[0].mxu0
          %v1453 = vadd.f32 %v1334, %v1452
          %v1454 = vpop.f32.mrb[0].mxu0
          %1455 = vmatprep.mubr.bf16.mxu0 0
          %1456 = vmatmul.mubr.bf16.gmra.mrb[0].mxu0 %v1312
          %v1457 = vpop.f32.mrb[0].mxu0
          %v1458 = vadd.f32 %v1334, %v1457
          %v1459 = vpop.f32.mrb[0].mxu0
          %v1460 = vpop.f32.mrb[0].mxu0
          %v1461 = vadd.f32 %v1334, %v1460
          %v1462 = vpop.f32.mrb[0].mxu0
          %1463 = vmatprep.mubr.bf16.mxu0 0
          %1464 = vmatmul.mubr.bf16.gmra.mrb[0].mxu0 %v1313
          %v1465 = vpop.f32.mrb[0].mxu0
          %v1466 = vadd.f32 %v1334, %v1465
          %v1467 = vpop.f32.mrb[0].mxu0
          %v1468 = vpop.f32.mrb[0].mxu0
          %v1469 = vadd.f32 %v1334, %v1468
          %v1470 = vpop.f32.mrb[0].mxu0
          %1471 = vmatprep.mubr.bf16.mxu0 0
          %1472 = vmatmul.mubr.bf16.gmra.mrb[0].mxu0 %v1314
          %v1473 = vpop.f32.mrb[0].mxu0
          %v1474 = vadd.f32 %v1334, %v1473
          %v1475 = vpop.f32.mrb[0].mxu0
          %v1476 = vpop.f32.mrb[0].mxu0
          %v1477 = vadd.f32 %v1334, %v1476
          %v1478 = vpop.f32.mrb[0].mxu0
          %1479 = vdwg.mxu0
          %p1480 = scmp.eq.s32.totalorder %s28, 1
          %v1481 = vmax.f32 %v1418, 0.0
          %v1482 = vmax.f32 %v1421, 0.0
          %v1483 = vmax.f32 %v1426, 0.0
          %v1484 = vmax.f32 %v1429, 0.0
          %v1485 = vmax.f32 %v1434, 0.0
          %v1486 = vmax.f32 %v1437, 0.0
          %v1487 = vmax.f32 %v1442, 0.0
          %v1488 = vmax.f32 %v1445, 0.0
          %v1489 = vmax.f32 %v1450, 0.0
          %v1490 = vmax.f32 %v1453, 0.0
          %v1491 = vmax.f32 %v1458, 0.0
          %v1492 = vmax.f32 %v1461, 0.0
          %v1493 = vmax.f32 %v1466, 0.0
          %v1494 = vmax.f32 %v1469, 0.0
          %v1495 = vmax.f32 %v1474, 0.0
          %v1496 = vmax.f32 %v1477, 0.0
          %s1497 = scalar_select %p1480, 1, 0
          %v1498 = vstv %s1497
          %vm1499 = vcmp.eq.s32.totalorder %v1498, 1
          %v1500 = vsel %vm1499, %v1418, %v1481
          %v1501 = vsel %vm1499, %v1421, %v1482
          %v1502 = vsel %vm1499, %v1426, %v1483
          %v1503 = vsel %vm1499, %v1429, %v1484
          %v1504 = vsel %vm1499, %v1434, %v1485
          %v1505 = vsel %vm1499, %v1437, %v1486
          %v1506 = vsel %vm1499, %v1442, %v1487
          %v1507 = vsel %vm1499, %v1445, %v1488
          %v1508 = vsel %vm1499, %v1450, %v1489
          %v1509 = vsel %vm1499, %v1453, %v1490
          %v1510 = vsel %vm1499, %v1458, %v1491
          %v1511 = vsel %vm1499, %v1461, %v1492
          %v1512 = vsel %vm1499, %v1466, %v1493
          %v1513 = vsel %vm1499, %v1469, %v1494
          %v1514 = vsel %vm1499, %v1474, %v1495
          %v1515 = vsel %vm1499, %v1477, %v1496
          %1516 = vst [vmem:[#allocation10] sm:$0xff] %v1500
          %1517 = vst [vmem:[#allocation10 + $0x8] sm:$0xff] %v1501
          %1518 = vst [vmem:[#allocation10 + $0x10] sm:$0xff] %v1502
          %1519 = vst [vmem:[#allocation10 + $0x18] sm:$0xff] %v1503
          %1520 = vst [vmem:[#allocation10 + $0x20] sm:$0xff] %v1504
          %1521 = vst [vmem:[#allocation10 + $0x28] sm:$0xff] %v1505
          %1522 = vst [vmem:[#allocation10 + $0x30] sm:$0xff] %v1506
          %1523 = vst [vmem:[#allocation10 + $0x38] sm:$0xff] %v1507
          %1524 = vst [vmem:[#allocation10 + $0x40] sm:$0xff] %v1508
          %1525 = vst [vmem:[#allocation10 + $0x48] sm:$0xff] %v1509
          %1526 = vst [vmem:[#allocation10 + $0x50] sm:$0xff] %v1510
          %1527 = vst [vmem:[#allocation10 + $0x58] sm:$0xff] %v1511
          %1528 = vst [vmem:[#allocation10 + $0x60] sm:$0xff] %v1512
          %1529 = vst [vmem:[#allocation10 + $0x68] sm:$0xff] %v1513
          %1530 = vst [vmem:[#allocation10 + $0x70] sm:$0xff] %v1514
          %1531 = vst [vmem:[#allocation10 + $0x78] sm:$0xff] %v1515
        $region76: #{tpu_custom_call.1} parent=51 // pred_fallthru
          _
        // Predicated region
        $region77: #{tpu_custom_call.1} parent=51 // pred_check
          %p1532 = pneg %p254
        $region78: #{tpu_custom_call.1} parent=51 // pred_check_branch
          %1534 = sbr.rel (%p1532) target = $region80
        $region79: #{tpu_custom_call.1} parent=51 // pred_region
          %s1536 = ssub.s32 2048, 2048
          %1537 = vsyncadd [#allocation6], %s1536
          %s1538 = sshll.u32 [#allocation10], 4
          %s1539 = int_to_ptr.vmem [resolvable:$true] %s1538
          %1544 = dma.vmem_to_hbm [thread:$0]  %s1539, 2048, %s8, [#allocation6], 128, 128, 8
        $region80: #{tpu_custom_call.1} parent=51 // pred_fallthru
          _
        // Predicated region
        $region81: #{tpu_custom_call.1} parent=51 // pred_check
          %p1545 = pneg %p254
        $region82: #{tpu_custom_call.1} parent=51 // pred_check_branch
          %1547 = sbr.rel (%p1545) target = $region84
        $region83: #{tpu_custom_call.1} parent=51 // pred_region
          %1548 = dma.done [#allocation6], 2048
        $region84: #{tpu_custom_call.1} parent=51 // pred_fallthru
          _
      $region52: #{tpu_custom_call.1} parent=5 // pred_fallthru
        _
      %p1549 = scmp.le.s32.totalorder 2, %s19
      // Predicated region
      $region85: #{tpu_custom_call.1} parent=5 // pred_check
        %p1550 = pneg %p1549
      $region86: #{tpu_custom_call.1} parent=5 // pred_check_branch
        %1552 = sbr.rel (%p1550) target = $region88
      $region87: #{tpu_custom_call.1} parent=5 // pred_region
        %s1553 = ssub.s32 %s19, 2
      $region88: #{tpu_custom_call.1} parent=5 // pred_fallthru
        _
    $region6: #{tpu_custom_call.1} parent=1 // loop_footer
      %s23 = sadd.s32 1, %s19
    $region7: #{tpu_custom_call.1} parent=1 // loop_footer_branch
      %18 = sbr.rel target = $region3
    $region8: #{tpu_custom_call.1} parent=1 // loop_exit
      _
    %1554 = vsyncpa [#allocation5], 1
    %s1555 = scalar_lea.sflag [#allocation5], 1
    %1556 = vsyncpa %s1555, 1
    %1557 = vsyncpa [#allocation8], 1
    %s1558 = scalar_lea.sflag [#allocation8], 1
    %1559 = vsyncpa %s1558, 1
    %1560 = vsyncpa [#allocation6], 1
    %s1561 = scalar_lea.sflag [#allocation6], 1
    %1562 = vsyncpa %s1561, 1

</llo_original>
